<compile_context>
chip_gen: v6e
topology: v6e:2x2x1
jax: 0.10.0
libtpu: 0.0.40
codegen_flags: <defaults>
</compile_context>

<pallas_src>
import jax
import jax.numpy as jnp
from jax.experimental import pallas as pl
from jax.experimental.pallas import tpu as pltpu

EXPANSION = 4
BN_EPS = 1e-5


# --------------------------------------------------------------------------
# Pallas kernel factory: one image per grid step, everything register/VMEM
# resident and channel-major lane-dense.
#   x_ref : (Cin, HW)   NCHW-flat input image (HW = 256 on the lane axis)
#   o_ref : (Cout, HW)  NCHW-flat output image (lane-dense, unmasked store)
# --------------------------------------------------------------------------
def _make_kernel(H, W, P, Cout):
    HW = H * W

    def shift_lanes(v, s):
        """y[:, i] = v[:, i + s] if 0 <= i + s < HW else 0 (s static)."""
        if s == 0:
            return v
        rows = v.shape[0]
        z = jnp.zeros((rows, abs(s)), v.dtype)
        if s > 0:
            return jnp.concatenate([v[:, s:], z], axis=1)
        return jnp.concatenate([z, v[:, :HW + s]], axis=1)

    def kernel(x_ref, w1_ref, w2_ref, w3_ref, ws_ref, b_ref, m_ref, o_ref):
        x = x_ref[...]                               # (Cin, HW) lane-dense

        b = b_ref[...]                               # (Cout, 3) packed biases
        b1 = b[0:P, 0:1]                             # conv1/bn1 bias
        b2 = b[0:P, 1:2]                             # conv2/bn2 bias
        b_out = b[:, 2:3]                            # bn3 bias + shortcut-bn bias
        masks = m_ref[...]                           # (2, HW) column-validity

        # ---- conv1 1x1 (+ BN1 folded) + ReLU : (P, Cin) @ (Cin, HW) -------
        h1 = jnp.maximum(
            jnp.dot(w1_ref[...], x, preferred_element_type=jnp.float32) + b1,
            0.0)                                     # (P, HW)

        # Column-shifted (and column-masked) copies of h1 for dx = -1, 0, +1.
        hx = {
            -1: shift_lanes(h1, -1) * masks[0:1, :],
            0: h1,
            1: shift_lanes(h1, 1) * masks[1:2, :],
        }

        # ---- conv2 3x3 (+ BN2 folded): 9 shifted matmul-accumulates -------
        # Row shifts (dy*W) in the flat layout are handled by zero-filled lane
        # shifts; column wrap is handled by the masks baked into hx above.
        w2 = w2_ref[...]                             # (P, 9*P): [o, (ky,kx,i)]
        acc = jnp.zeros((P, HW), jnp.float32)
        for ky in range(3):
            for kx in range(3):
                dy, dx = ky - 1, kx - 1
                k = ky * 3 + kx
                tap = w2[:, k * P:(k + 1) * P]       # (P_out, P_in)
                acc = acc + jnp.dot(tap, shift_lanes(hx[dx], dy * W),
                                    preferred_element_type=jnp.float32)
        h2 = jnp.maximum(acc + b2, 0.0)              # (P, HW)

        # ---- conv3 1x1 (+ BN3) + shortcut 1x1 conv (+ BN) + ReLU ----------
        out = (jnp.dot(w3_ref[...], h2, preferred_element_type=jnp.float32)
               + jnp.dot(ws_ref[...], x, preferred_element_type=jnp.float32)
               + b_out)
        o_ref[...] = jnp.maximum(out, 0.0)           # (Cout, HW) lane-dense

    return kernel


# --------------------------------------------------------------------------
# Wrapper: only free reshapes outside the kernel.
# --------------------------------------------------------------------------
def bottleneck_forward(x_nchw, kp):
    N, Cin, H, W = x_nchw.shape
    HW = H * W
    P = kp["w1t"].shape[0]
    Cout = kp["w3t"].shape[0]

    x3 = x_nchw.reshape(N, Cin, HW)            # free reshape, lane-dense DMA

    # Column-validity masks for dx = -1 / +1 (host-side constants).
    cols = jnp.arange(HW, dtype=jnp.int32) % W
    mpack = jnp.stack([(cols >= 1), (cols <= W - 2)],
                      axis=0).astype(jnp.float32)              # (2, HW)

    kernel = _make_kernel(H, W, P, Cout)

    grid_spec = pltpu.PrefetchScalarGridSpec(
        num_scalar_prefetch=0,
        grid=(N,),
        in_specs=[
            pl.BlockSpec((None, Cin, HW), lambda n: (n, 0, 0)),  # x (per image)
            pl.BlockSpec((P, Cin), lambda n: (0, 0)),            # w1^T * s1
            pl.BlockSpec((P, 9 * P), lambda n: (0, 0)),          # w2 taps * s2
            pl.BlockSpec((Cout, P), lambda n: (0, 0)),           # w3^T * s3
            pl.BlockSpec((Cout, Cin), lambda n: (0, 0)),         # ws^T * ss
            pl.BlockSpec((Cout, 3), lambda n: (0, 0)),           # packed biases
            pl.BlockSpec((2, HW), lambda n: (0, 0)),             # column masks
        ],
        out_specs=pl.BlockSpec((None, Cout, HW), lambda n: (n, 0, 0)),
    )

    out3 = pl.pallas_call(
        kernel,
        out_shape=jax.ShapeDtypeStruct((N, Cout, HW), jnp.float32),
        grid_spec=grid_spec,
        compiler_params=pltpu.CompilerParams(
            dimension_semantics=("parallel",)),
    )(x3, kp["w1t"], kp["w2p"], kp["w3t"], kp["wst"], kp["bpack"], mpack)

    return out3.reshape(N, Cout, H, W)         # free reshape back to NCHW


# --------------------------------------------------------------------------
# Deterministic parameter construction (matches shapes in Bottleneck.__init__)
# --------------------------------------------------------------------------
def _fold_bn(gamma, beta, mean, var):
    s = gamma / jnp.sqrt(var + BN_EPS)
    b = beta - mean * s
    return s[None, :], b[None, :]              # (1, C)


def init_params(key, in_planes, planes):
    cout = EXPANSION * planes
    ks = jax.random.split(key, 8)

    def bn_params(k, c):
        k1, k2, k3, k4 = jax.random.split(k, 4)
        gamma = 1.0 + 0.1 * jax.random.normal(k1, (c,), jnp.float32)
        beta = 0.1 * jax.random.normal(k2, (c,), jnp.float32)
        mean = 0.1 * jax.random.normal(k3, (c,), jnp.float32)
        var = 1.0 + 0.1 * jax.random.uniform(k4, (c,), jnp.float32)
        return _fold_bn(gamma, beta, mean, var)

    # conv weights stored as (Cin, Cout); conv2 as HWIO.
    w1 = jax.random.normal(ks[0], (in_planes, planes), jnp.float32) / jnp.sqrt(in_planes)
    w2_hwio = jax.random.normal(ks[1], (3, 3, planes, planes), jnp.float32) / jnp.sqrt(9.0 * planes)
    w3 = jax.random.normal(ks[2], (planes, cout), jnp.float32) / jnp.sqrt(planes)
    ws = jax.random.normal(ks[3], (in_planes, cout), jnp.float32) / jnp.sqrt(in_planes)

    s1, b1 = bn_params(ks[4], planes)
    s2, b2 = bn_params(ks[5], planes)
    s3, b3 = bn_params(ks[6], cout)
    ss, bs = bn_params(ks[7], cout)

    return dict(w1=w1, w2_hwio=w2_hwio, w3=w3, ws=ws,
                s1=s1, b1=b1, s2=s2, b2=b2, s3=s3, b3=b3, ss=ss, bs=bs)


def prepare_kernel_params(p):
    """Fold BN scales into the conv weights, pre-transpose to channel-major
    (Cout, Cin) layout, and pack the remaining biases column-wise."""
    Cin, P = p["w1"].shape
    Cout = p["w3"].shape[1]

    w1t = (p["w1"] * p["s1"]).T                                    # (P, Cin)
    w2f = p["w2_hwio"] * p["s2"].reshape(1, 1, 1, P)               # (3,3,I,O)
    w2p = jnp.transpose(w2f, (3, 0, 1, 2)).reshape(P, 9 * P)       # (O, ky*kx*I)
    w3t = (p["w3"] * p["s3"]).T                                    # (Cout, P)
    wst = (p["ws"] * p["ss"]).T                                    # (Cout, Cin)

    pad = Cout - P
    bpack = jnp.stack([
        jnp.pad(p["b1"].reshape(P), (0, pad)),                     # col 0: b1
        jnp.pad(p["b2"].reshape(P), (0, pad)),                     # col 1: b2
        (p["b3"] + p["bs"]).reshape(Cout),                         # col 2: b3+bs
    ], axis=1)                                                     # (Cout, 3)
    return dict(w1t=w1t, w2p=w2p, w3t=w3t, wst=wst, bpack=bpack)


# --------------------------------------------------------------------------
# Pure-JAX reference (lax.conv) for a correctness smoke check
# --------------------------------------------------------------------------
def reference_forward(x_nchw, p):
    x = jnp.transpose(x_nchw, (0, 2, 3, 1))

    def conv(h, w_hwio, pad):
        return jax.lax.conv_general_dilated(
            h, w_hwio, window_strides=(1, 1),
            padding=[(pad, pad), (pad, pad)],
            dimension_numbers=("NHWC", "HWIO", "NHWC"))

    Cin, P = p["w1"].shape
    Cout = p["w3"].shape[1]
    h = jax.nn.relu(conv(x, p["w1"].reshape(1, 1, Cin, P), 0) * p["s1"] + p["b1"])
    h = jax.nn.relu(conv(h, p["w2_hwio"], 1) * p["s2"] + p["b2"])
    h = conv(h, p["w3"].reshape(1, 1, P, Cout), 0) * p["s3"] + p["b3"]
    sc = conv(x, p["ws"].reshape(1, 1, Cin, Cout), 0) * p["ss"] + p["bs"]
    out = jax.nn.relu(h + sc)
    return jnp.transpose(out, (0, 3, 1, 2))


if __name__ == "__main__":
    key = jax.random.PRNGKey(0)
    k_x, k_p = jax.random.split(key)

    N, in_planes, H, W = 2, 4, 16, 16
    planes = 4                          # expansion*planes = 16 != 4 -> conv+BN shortcut
    x_nchw = jax.random.normal(k_x, (N, in_planes, H, W), jnp.float32)

    params = init_params(k_p, in_planes, planes)
    kparams = prepare_kernel_params(params)

    out = bottleneck_forward(x_nchw, kparams)
    out = jax.block_until_ready(out)

    assert out.shape == (N, EXPANSION * planes, H, W), out.shape

    ref = reference_forward(x_nchw, params)
    max_err = float(jnp.max(jnp.abs(out - ref)))
    assert max_err < 1e-3, f"mismatch vs reference: max_err={max_err}"

    print("KERNEL_OK")
</pallas_src>

<mosaic_0001>
module attributes {stable_mosaic.version = 11 : i64} {
  func.func @kernel(%arg0: i32, %arg1: memref<1x4x256xf32, #tpu.memory_space<vmem>>, %arg2: memref<4x4xf32, #tpu.memory_space<vmem>>, %arg3: memref<4x36xf32, #tpu.memory_space<vmem>>, %arg4: memref<16x4xf32, #tpu.memory_space<vmem>>, %arg5: memref<16x4xf32, #tpu.memory_space<vmem>>, %arg6: memref<16x3xf32, #tpu.memory_space<vmem>>, %arg7: memref<2x256xf32, #tpu.memory_space<vmem>>, %arg8: memref<1x16x256xf32, #tpu.memory_space<vmem>>) attributes {dimension_semantics = [#tpu.dimension_semantics<parallel>], iteration_bounds = array<i64: 2>, scalar_prefetch = 0 : i64, scratch_operands = 0 : i64, tpu.core_type = #tpu.core_type<tc>, window_params = [{transform_indices = @transform_0, window_bounds = array<i64: 1, 4, 256>}, {pipeline_mode = #tpu.pipeline_mode<synchronous>, transform_indices = @transform_1, window_bounds = array<i64: 4, 4>}, {pipeline_mode = #tpu.pipeline_mode<synchronous>, transform_indices = @transform_2, window_bounds = array<i64: 4, 36>}, {pipeline_mode = #tpu.pipeline_mode<synchronous>, transform_indices = @transform_3, window_bounds = array<i64: 16, 4>}, {pipeline_mode = #tpu.pipeline_mode<synchronous>, transform_indices = @transform_4, window_bounds = array<i64: 16, 4>}, {pipeline_mode = #tpu.pipeline_mode<synchronous>, transform_indices = @transform_5, window_bounds = array<i64: 16, 3>}, {pipeline_mode = #tpu.pipeline_mode<synchronous>, transform_indices = @transform_6, window_bounds = array<i64: 2, 256>}, {transform_indices = @transform_7, window_bounds = array<i64: 1, 16, 256>}]} {
    %c0 = arith.constant 0 : index
    %c0_0 = arith.constant 0 : index
    %c0_1 = arith.constant 0 : index
    %0 = vector.load %arg1[%c0, %c0_0, %c0_1] : memref<1x4x256xf32, #tpu.memory_space<vmem>>, vector<1x4x256xf32>
    %1 = vector.shape_cast %0 : vector<1x4x256xf32> to vector<4x256xf32>
    %c0_2 = arith.constant 0 : index
    %c0_3 = arith.constant 0 : index
    %2 = vector.load %arg6[%c0_2, %c0_3] : memref<16x3xf32, #tpu.memory_space<vmem>>, vector<16x3xf32>
    %3 = vector.extract_strided_slice %2 {offsets = [0, 0], sizes = [4, 1], strides = [1, 1]} : vector<16x3xf32> to vector<4x1xf32>
    %4 = vector.extract_strided_slice %2 {offsets = [0, 1], sizes = [4, 1], strides = [1, 1]} : vector<16x3xf32> to vector<4x1xf32>
    %5 = vector.extract_strided_slice %2 {offsets = [0, 2], sizes = [16, 1], strides = [1, 1]} : vector<16x3xf32> to vector<16x1xf32>
    %c0_4 = arith.constant 0 : index
    %c0_5 = arith.constant 0 : index
    %6 = vector.load %arg7[%c0_4, %c0_5] : memref<2x256xf32, #tpu.memory_space<vmem>>, vector<2x256xf32>
    %c0_6 = arith.constant 0 : index
    %c0_7 = arith.constant 0 : index
    %7 = vector.load %arg2[%c0_6, %c0_7] : memref<4x4xf32, #tpu.memory_space<vmem>>, vector<4x4xf32>
    %cst = arith.constant dense<0.000000e+00> : vector<4x256xf32>
    %8 = tpu.matmul %7, %1, %cst {dimension_numbers = #tpu.dot_dimension_numbers<[1], [0], [0], [1], [0, 0, 1, 1], [], []>} : vector<4x4xf32>, vector<4x256xf32>, vector<4x256xf32> -> vector<4x256xf32>
    %9 = vector.broadcast %3 : vector<4x1xf32> to vector<4x256xf32>
    %10 = arith.addf %8, %9 : vector<4x256xf32>
    %cst_8 = arith.constant 0.000000e+00 : f32
    %11 = vector.broadcast %cst_8 : f32 to vector<4x256xf32>
    %12 = arith.maximumf %10, %11 : vector<4x256xf32>
    %cst_9 = arith.constant 0.000000e+00 : f32
    %13 = vector.broadcast %cst_9 : f32 to vector<4x1xf32>
    %14 = vector.extract_strided_slice %12 {offsets = [0, 0], sizes = [4, 255], strides = [1, 1]} : vector<4x256xf32> to vector<4x255xf32>
    %15 = tpu.concatenate %13, %14 in 1 : vector<4x1xf32>, vector<4x255xf32> -> vector<4x256xf32>
    %16 = vector.extract_strided_slice %6 {offsets = [0, 0], sizes = [1, 256], strides = [1, 1]} : vector<2x256xf32> to vector<1x256xf32>
    %17 = vector.broadcast %16 : vector<1x256xf32> to vector<4x256xf32>
    %18 = arith.mulf %15, %17 : vector<4x256xf32>
    %cst_10 = arith.constant 0.000000e+00 : f32
    %19 = vector.broadcast %cst_10 : f32 to vector<4x1xf32>
    %20 = vector.extract_strided_slice %12 {offsets = [0, 1], sizes = [4, 255], strides = [1, 1]} : vector<4x256xf32> to vector<4x255xf32>
    %21 = tpu.concatenate %20, %19 in 1 : vector<4x255xf32>, vector<4x1xf32> -> vector<4x256xf32>
    %22 = vector.extract_strided_slice %6 {offsets = [1, 0], sizes = [1, 256], strides = [1, 1]} : vector<2x256xf32> to vector<1x256xf32>
    %23 = vector.broadcast %22 : vector<1x256xf32> to vector<4x256xf32>
    %24 = arith.mulf %21, %23 : vector<4x256xf32>
    %c0_11 = arith.constant 0 : index
    %c0_12 = arith.constant 0 : index
    %25 = vector.load %arg3[%c0_11, %c0_12] : memref<4x36xf32, #tpu.memory_space<vmem>>, vector<4x36xf32>
    %cst_13 = arith.constant 0.000000e+00 : f32
    %26 = vector.broadcast %cst_13 : f32 to vector<4x256xf32>
    %27 = vector.extract_strided_slice %25 {offsets = [0, 0], sizes = [4, 4], strides = [1, 1]} : vector<4x36xf32> to vector<4x4xf32>
    %cst_14 = arith.constant 0.000000e+00 : f32
    %28 = vector.broadcast %cst_14 : f32 to vector<4x16xf32>
    %29 = vector.extract_strided_slice %18 {offsets = [0, 0], sizes = [4, 240], strides = [1, 1]} : vector<4x256xf32> to vector<4x240xf32>
    %30 = tpu.concatenate %28, %29 in 1 : vector<4x16xf32>, vector<4x240xf32> -> vector<4x256xf32>
    %cst_15 = arith.constant dense<0.000000e+00> : vector<4x256xf32>
    %31 = tpu.matmul %27, %30, %cst_15 {dimension_numbers = #tpu.dot_dimension_numbers<[1], [0], [0], [1], [0, 0, 1, 1], [], []>} : vector<4x4xf32>, vector<4x256xf32>, vector<4x256xf32> -> vector<4x256xf32>
    %32 = arith.addf %26, %31 : vector<4x256xf32>
    %33 = vector.extract_strided_slice %25 {offsets = [0, 4], sizes = [4, 4], strides = [1, 1]} : vector<4x36xf32> to vector<4x4xf32>
    %cst_16 = arith.constant 0.000000e+00 : f32
    %34 = vector.broadcast %cst_16 : f32 to vector<4x16xf32>
    %35 = vector.extract_strided_slice %12 {offsets = [0, 0], sizes = [4, 240], strides = [1, 1]} : vector<4x256xf32> to vector<4x240xf32>
    %36 = tpu.concatenate %34, %35 in 1 : vector<4x16xf32>, vector<4x240xf32> -> vector<4x256xf32>
    %cst_17 = arith.constant dense<0.000000e+00> : vector<4x256xf32>
    %37 = tpu.matmul %33, %36, %cst_17 {dimension_numbers = #tpu.dot_dimension_numbers<[1], [0], [0], [1], [0, 0, 1, 1], [], []>} : vector<4x4xf32>, vector<4x256xf32>, vector<4x256xf32> -> vector<4x256xf32>
    %38 = arith.addf %32, %37 : vector<4x256xf32>
    %39 = vector.extract_strided_slice %25 {offsets = [0, 8], sizes = [4, 4], strides = [1, 1]} : vector<4x36xf32> to vector<4x4xf32>
    %cst_18 = arith.constant 0.000000e+00 : f32
    %40 = vector.broadcast %cst_18 : f32 to vector<4x16xf32>
    %41 = vector.extract_strided_slice %24 {offsets = [0, 0], sizes = [4, 240], strides = [1, 1]} : vector<4x256xf32> to vector<4x240xf32>
    %42 = tpu.concatenate %40, %41 in 1 : vector<4x16xf32>, vector<4x240xf32> -> vector<4x256xf32>
    %cst_19 = arith.constant dense<0.000000e+00> : vector<4x256xf32>
    %43 = tpu.matmul %39, %42, %cst_19 {dimension_numbers = #tpu.dot_dimension_numbers<[1], [0], [0], [1], [0, 0, 1, 1], [], []>} : vector<4x4xf32>, vector<4x256xf32>, vector<4x256xf32> -> vector<4x256xf32>
    %44 = arith.addf %38, %43 : vector<4x256xf32>
    %45 = vector.extract_strided_slice %25 {offsets = [0, 12], sizes = [4, 4], strides = [1, 1]} : vector<4x36xf32> to vector<4x4xf32>
    %cst_20 = arith.constant dense<0.000000e+00> : vector<4x256xf32>
    %46 = tpu.matmul %45, %18, %cst_20 {dimension_numbers = #tpu.dot_dimension_numbers<[1], [0], [0], [1], [0, 0, 1, 1], [], []>} : vector<4x4xf32>, vector<4x256xf32>, vector<4x256xf32> -> vector<4x256xf32>
    %47 = arith.addf %44, %46 : vector<4x256xf32>
    %48 = vector.extract_strided_slice %25 {offsets = [0, 16], sizes = [4, 4], strides = [1, 1]} : vector<4x36xf32> to vector<4x4xf32>
    %cst_21 = arith.constant dense<0.000000e+00> : vector<4x256xf32>
    %49 = tpu.matmul %48, %12, %cst_21 {dimension_numbers = #tpu.dot_dimension_numbers<[1], [0], [0], [1], [0, 0, 1, 1], [], []>} : vector<4x4xf32>, vector<4x256xf32>, vector<4x256xf32> -> vector<4x256xf32>
    %50 = arith.addf %47, %49 : vector<4x256xf32>
    %51 = vector.extract_strided_slice %25 {offsets = [0, 20], sizes = [4, 4], strides = [1, 1]} : vector<4x36xf32> to vector<4x4xf32>
    %cst_22 = arith.constant dense<0.000000e+00> : vector<4x256xf32>
    %52 = tpu.matmul %51, %24, %cst_22 {dimension_numbers = #tpu.dot_dimension_numbers<[1], [0], [0], [1], [0, 0, 1, 1], [], []>} : vector<4x4xf32>, vector<4x256xf32>, vector<4x256xf32> -> vector<4x256xf32>
    %53 = arith.addf %50, %52 : vector<4x256xf32>
    %54 = vector.extract_strided_slice %25 {offsets = [0, 24], sizes = [4, 4], strides = [1, 1]} : vector<4x36xf32> to vector<4x4xf32>
    %cst_23 = arith.constant 0.000000e+00 : f32
    %55 = vector.broadcast %cst_23 : f32 to vector<4x16xf32>
    %56 = vector.extract_strided_slice %18 {offsets = [0, 16], sizes = [4, 240], strides = [1, 1]} : vector<4x256xf32> to vector<4x240xf32>
    %57 = tpu.concatenate %56, %55 in 1 : vector<4x240xf32>, vector<4x16xf32> -> vector<4x256xf32>
    %cst_24 = arith.constant dense<0.000000e+00> : vector<4x256xf32>
    %58 = tpu.matmul %54, %57, %cst_24 {dimension_numbers = #tpu.dot_dimension_numbers<[1], [0], [0], [1], [0, 0, 1, 1], [], []>} : vector<4x4xf32>, vector<4x256xf32>, vector<4x256xf32> -> vector<4x256xf32>
    %59 = arith.addf %53, %58 : vector<4x256xf32>
    %60 = vector.extract_strided_slice %25 {offsets = [0, 28], sizes = [4, 4], strides = [1, 1]} : vector<4x36xf32> to vector<4x4xf32>
    %cst_25 = arith.constant 0.000000e+00 : f32
    %61 = vector.broadcast %cst_25 : f32 to vector<4x16xf32>
    %62 = vector.extract_strided_slice %12 {offsets = [0, 16], sizes = [4, 240], strides = [1, 1]} : vector<4x256xf32> to vector<4x240xf32>
    %63 = tpu.concatenate %62, %61 in 1 : vector<4x240xf32>, vector<4x16xf32> -> vector<4x256xf32>
    %cst_26 = arith.constant dense<0.000000e+00> : vector<4x256xf32>
    %64 = tpu.matmul %60, %63, %cst_26 {dimension_numbers = #tpu.dot_dimension_numbers<[1], [0], [0], [1], [0, 0, 1, 1], [], []>} : vector<4x4xf32>, vector<4x256xf32>, vector<4x256xf32> -> vector<4x256xf32>
    %65 = arith.addf %59, %64 : vector<4x256xf32>
    %66 = vector.extract_strided_slice %25 {offsets = [0, 32], sizes = [4, 4], strides = [1, 1]} : vector<4x36xf32> to vector<4x4xf32>
    %cst_27 = arith.constant 0.000000e+00 : f32
    %67 = vector.broadcast %cst_27 : f32 to vector<4x16xf32>
    %68 = vector.extract_strided_slice %24 {offsets = [0, 16], sizes = [4, 240], strides = [1, 1]} : vector<4x256xf32> to vector<4x240xf32>
    %69 = tpu.concatenate %68, %67 in 1 : vector<4x240xf32>, vector<4x16xf32> -> vector<4x256xf32>
    %cst_28 = arith.constant dense<0.000000e+00> : vector<4x256xf32>
    %70 = tpu.matmul %66, %69, %cst_28 {dimension_numbers = #tpu.dot_dimension_numbers<[1], [0], [0], [1], [0, 0, 1, 1], [], []>} : vector<4x4xf32>, vector<4x256xf32>, vector<4x256xf32> -> vector<4x256xf32>
    %71 = arith.addf %65, %70 : vector<4x256xf32>
    %72 = vector.broadcast %4 : vector<4x1xf32> to vector<4x256xf32>
    %73 = arith.addf %71, %72 : vector<4x256xf32>
    %cst_29 = arith.constant 0.000000e+00 : f32
    %74 = vector.broadcast %cst_29 : f32 to vector<4x256xf32>
    %75 = arith.maximumf %73, %74 : vector<4x256xf32>
    %c0_30 = arith.constant 0 : index
    %c0_31 = arith.constant 0 : index
    %76 = vector.load %arg4[%c0_30, %c0_31] : memref<16x4xf32, #tpu.memory_space<vmem>>, vector<16x4xf32>
    %cst_32 = arith.constant dense<0.000000e+00> : vector<16x256xf32>
    %77 = tpu.matmul %76, %75, %cst_32 {dimension_numbers = #tpu.dot_dimension_numbers<[1], [0], [0], [1], [0, 0, 1, 1], [], []>} : vector<16x4xf32>, vector<4x256xf32>, vector<16x256xf32> -> vector<16x256xf32>
    %c0_33 = arith.constant 0 : index
    %c0_34 = arith.constant 0 : index
    %78 = vector.load %arg5[%c0_33, %c0_34] : memref<16x4xf32, #tpu.memory_space<vmem>>, vector<16x4xf32>
    %cst_35 = arith.constant dense<0.000000e+00> : vector<16x256xf32>
    %79 = tpu.matmul %78, %1, %cst_35 {dimension_numbers = #tpu.dot_dimension_numbers<[1], [0], [0], [1], [0, 0, 1, 1], [], []>} : vector<16x4xf32>, vector<4x256xf32>, vector<16x256xf32> -> vector<16x256xf32>
    %80 = arith.addf %77, %79 : vector<16x256xf32>
    %81 = vector.broadcast %5 : vector<16x1xf32> to vector<16x256xf32>
    %82 = arith.addf %80, %81 : vector<16x256xf32>
    %cst_36 = arith.constant 0.000000e+00 : f32
    %83 = vector.broadcast %cst_36 : f32 to vector<16x256xf32>
    %84 = arith.maximumf %82, %83 : vector<16x256xf32>
    %c0_37 = arith.constant 0 : index
    %c0_38 = arith.constant 0 : index
    %c0_39 = arith.constant 0 : index
    %85 = vector.load %arg8[%c0_37, %c0_38, %c0_39] : memref<1x16x256xf32, #tpu.memory_space<vmem>>, vector<1x16x256xf32>
    %86 = vector.shape_cast %85 : vector<1x16x256xf32> to vector<16x256xf32>
    %87 = vector.shape_cast %84 : vector<16x256xf32> to vector<1x16x256xf32>
    tpu.vector_store %arg8[%c0_37, %c0_38, %c0_39], %87 {strides = array<i32>} : memref<1x16x256xf32, #tpu.memory_space<vmem>>, vector<1x16x256xf32>,
    return
  }
  func.func @transform_0(%arg0: i32) -> (i32, i32, i32) {
    %c0_i32 = arith.constant 0 : i32
    %c0_i32_0 = arith.constant 0 : i32
    %c0_i32_1 = arith.constant 0 : i32
    return %arg0, %c0_i32, %c0_i32_0 : i32, i32, i32
  }
  func.func @transform_1(%arg0: i32) -> (i32, i32) {
    %c0_i32 = arith.constant 0 : i32
    %c0_i32_0 = arith.constant 0 : i32
    %c0_i32_1 = arith.constant 0 : i32
    return %c0_i32, %c0_i32_0 : i32, i32
  }
  func.func @transform_2(%arg0: i32) -> (i32, i32) {
    %c0_i32 = arith.constant 0 : i32
    %c0_i32_0 = arith.constant 0 : i32
    %c0_i32_1 = arith.constant 0 : i32
    return %c0_i32, %c0_i32_0 : i32, i32
  }
  func.func @transform_3(%arg0: i32) -> (i32, i32) {
    %c0_i32 = arith.constant 0 : i32
    %c0_i32_0 = arith.constant 0 : i32
    %c0_i32_1 = arith.constant 0 : i32
    return %c0_i32, %c0_i32_0 : i32, i32
  }
  func.func @transform_4(%arg0: i32) -> (i32, i32) {
    %c0_i32 = arith.constant 0 : i32
    %c0_i32_0 = arith.constant 0 : i32
    %c0_i32_1 = arith.constant 0 : i32
    return %c0_i32, %c0_i32_0 : i32, i32
  }
  func.func @transform_5(%arg0: i32) -> (i32, i32) {
    %c0_i32 = arith.constant 0 : i32
    %c0_i32_0 = arith.constant 0 : i32
    %c0_i32_1 = arith.constant 0 : i32
    return %c0_i32, %c0_i32_0 : i32, i32
  }
  func.func @transform_6(%arg0: i32) -> (i32, i32) {
    %c0_i32 = arith.constant 0 : i32
    %c0_i32_0 = arith.constant 0 : i32
    %c0_i32_1 = arith.constant 0 : i32
    return %c0_i32, %c0_i32_0 : i32, i32
  }
  func.func @transform_7(%arg0: i32) -> (i32, i32, i32) {
    %c0_i32 = arith.constant 0 : i32
    %c0_i32_0 = arith.constant 0 : i32
    %c0_i32_1 = arith.constant 0 : i32
    return %arg0, %c0_i32, %c0_i32_0 : i32, i32, i32
  }
}

</mosaic_0001>

<llo_original>
// kernel: tpu_custom_call.1
$region0: #{tpu_custom_call.1}
  #allocation0 [shape = 'u32[]', space=smem, size = 0x4, offset = 0x4, fixed_abs, tag = 'smem constant byte address 0x4 - core index']
  #allocation1 [shape = 'u32[144,128]{1,0:T(1,128)}', space=vmem, size = 0x12000, scoped, tag = 'internal scratch']
  %s0 = inlined_call_operand.vmem [shape: f32[2,4,256], index: 0, kind: input, shape index: {}]
  %s1 = inlined_call_operand.vmem [shape: f32[4,4], index: 1, kind: input, shape index: {}]
  %s2 = inlined_call_operand.vmem [shape: f32[4,36], index: 2, kind: input, shape index: {}]
  %s3 = inlined_call_operand.vmem [shape: f32[16,4], index: 3, kind: input, shape index: {}]
  %s4 = inlined_call_operand.vmem [shape: f32[16,4], index: 4, kind: input, shape index: {}]
  %s5 = inlined_call_operand.vmem [shape: f32[16,3], index: 5, kind: input, shape index: {}]
  %s6 = inlined_call_operand.vmem [shape: f32[2,256], index: 6, kind: input, shape index: {}]
  %s7 = inlined_call_operand.hbm [shape: f32[2,16,256], index: 7, kind: output, shape index: {}]
  %s8 = sld [smem:[#allocation0]]
  $region61: #{tpu_custom_call.1} parent=0
    _
  %s10 = ssub.s32 1, %s8
  %s11 = scalar_select 0, %s10, %s8
  $region1: #{tpu_custom_call.1} parent=0
    #allocation2 [shape = 'u8[32768]{0}', space=vmem, size = 0x8000, scoped, tag = 'output window, operand 0']
    #allocation3 [shape = 's32[2]{0}', space=sflag, size = 0x8, scoped, tag = 'scoped memory for tpu_custom_call.1']
    %12 = vsyncpa [#allocation3], 0
    %s13 = scalar_lea.sflag [#allocation3], 1
    %14 = vsyncpa %s13, 0
    loop: start=0, step=1, limit=4
    $region2: #{tpu_custom_call.1} parent=1 // loop_pre_header
      _
    $region3: #{tpu_custom_call.1} parent=1 // loop_header
      %s16 = sphi 0, %s20
      %p17 = scmp.ge.s32.totalorder %s16, 4
      %s26 = sphi 0, %s28
      %s29 = sphi 0, %s26
      %s30 = sphi 0, %s29
      %s46 = sphi 0, %s30
      %s50 = sphi 0, %s50
      %s52 = sphi 0, %s50
      %s53 = sphi 0, %s52
      %s67 = sphi 0, %s53
      %s71 = sphi 0, %s71
      %s73 = sphi 0, %s71
      %s74 = sphi 0, %s73
      %s88 = sphi 0, %s74
      %s92 = sphi 0, %s92
      %s94 = sphi 0, %s92
      %s95 = sphi 0, %s94
      %s109 = sphi 0, %s95
      %s113 = sphi 0, %s113
      %s115 = sphi 0, %s113
      %s116 = sphi 0, %s115
      %s130 = sphi 0, %s116
      %s134 = sphi 0, %s134
      %s136 = sphi 0, %s134
      %s137 = sphi 0, %s136
      %s151 = sphi 0, %s137
      %s155 = sphi 0, %s155
      %s157 = sphi 0, %s155
      %s158 = sphi 0, %s157
      %s172 = sphi 0, %s158
      %s178 = sphi 0, %s180
      %s181 = sphi 0, %s178
      %s182 = sphi 0, %s181
      %s198 = sphi 0, %s182
    $region4: #{tpu_custom_call.1} parent=1 // loop_header_branch
      %19 = sbr.rel (%p17) target = $region8
    $region5: #{tpu_custom_call.1} parent=1 // loop_body
      %s21 = ssub.s32 %s16, 1
      %s22 = ssub.s32 %s16, 2
      %s23 = sadd.s32 %s16, 1
      %s24 = ssub.s32 %s16, %s23
      %p25 = scmp.eq.s32.totalorder %s24, 0
      %s27 = sadd.s32 %s26, 1
      %s28 = scalar_select %p25, %s26, %s27
      %p31 = pneg %p25
      %p32 = scmp.eq.s32.totalorder %s16, 1
      %p33 = por %p31, %p32
      %p34 = scmp.ne.s32.totalorder %s26, %s29
      %p35 = scmp.eq.s32.totalorder %s16, 0
      %p36 = por %p34, %p35
      %p37 = scmp.ne.s32.totalorder %s26, %s29
      %p38 = scmp.eq.s32.totalorder %s21, 1
      %p39 = por %p37, %p38
      %p40 = scmp.ne.s32.totalorder %s29, %s30
      %p41 = scmp.eq.s32.totalorder %s21, 0
      %p42 = por %p40, %p41
      %p43 = scmp.ne.s32.totalorder %s29, %s30
      %p44 = scmp.eq.s32.totalorder %s22, 1
      %p45 = por %p43, %p44
      %p47 = scmp.ne.s32.totalorder %s30, %s46
      %p48 = scmp.eq.s32.totalorder %s22, 0
      %p49 = por %p47, %p48
      %s51 = sadd.s32 %s50, 1
      %p54 = scmp.eq.s32.totalorder %s16, 1
      %p55 = scmp.ne.s32.totalorder %s50, %s52
      %p56 = scmp.eq.s32.totalorder %s16, 0
      %p57 = por %p55, %p56
      %p58 = scmp.ne.s32.totalorder %s50, %s52
      %p59 = scmp.eq.s32.totalorder %s21, 1
      %p60 = por %p58, %p59
      %p61 = scmp.ne.s32.totalorder %s52, %s53
      %p62 = scmp.eq.s32.totalorder %s21, 0
      %p63 = por %p61, %p62
      %p64 = scmp.ne.s32.totalorder %s52, %s53
      %p65 = scmp.eq.s32.totalorder %s22, 1
      %p66 = por %p64, %p65
      %p68 = scmp.ne.s32.totalorder %s53, %s67
      %p69 = scmp.eq.s32.totalorder %s22, 0
      %p70 = por %p68, %p69
      %s72 = sadd.s32 %s71, 1
      %p75 = scmp.eq.s32.totalorder %s16, 1
      %p76 = scmp.ne.s32.totalorder %s71, %s73
      %p77 = scmp.eq.s32.totalorder %s16, 0
      %p78 = por %p76, %p77
      %p79 = scmp.ne.s32.totalorder %s71, %s73
      %p80 = scmp.eq.s32.totalorder %s21, 1
      %p81 = por %p79, %p80
      %p82 = scmp.ne.s32.totalorder %s73, %s74
      %p83 = scmp.eq.s32.totalorder %s21, 0
      %p84 = por %p82, %p83
      %p85 = scmp.ne.s32.totalorder %s73, %s74
      %p86 = scmp.eq.s32.totalorder %s22, 1
      %p87 = por %p85, %p86
      %p89 = scmp.ne.s32.totalorder %s74, %s88
      %p90 = scmp.eq.s32.totalorder %s22, 0
      %p91 = por %p89, %p90
      %s93 = sadd.s32 %s92, 1
      %p96 = scmp.eq.s32.totalorder %s16, 1
      %p97 = scmp.ne.s32.totalorder %s92, %s94
      %p98 = scmp.eq.s32.totalorder %s16, 0
      %p99 = por %p97, %p98
      %p100 = scmp.ne.s32.totalorder %s92, %s94
      %p101 = scmp.eq.s32.totalorder %s21, 1
      %p102 = por %p100, %p101
      %p103 = scmp.ne.s32.totalorder %s94, %s95
      %p104 = scmp.eq.s32.totalorder %s21, 0
      %p105 = por %p103, %p104
      %p106 = scmp.ne.s32.totalorder %s94, %s95
      %p107 = scmp.eq.s32.totalorder %s22, 1
      %p108 = por %p106, %p107
      %p110 = scmp.ne.s32.totalorder %s95, %s109
      %p111 = scmp.eq.s32.totalorder %s22, 0
      %p112 = por %p110, %p111
      %s114 = sadd.s32 %s113, 1
      %p117 = scmp.eq.s32.totalorder %s16, 1
      %p118 = scmp.ne.s32.totalorder %s113, %s115
      %p119 = scmp.eq.s32.totalorder %s16, 0
      %p120 = por %p118, %p119
      %p121 = scmp.ne.s32.totalorder %s113, %s115
      %p122 = scmp.eq.s32.totalorder %s21, 1
      %p123 = por %p121, %p122
      %p124 = scmp.ne.s32.totalorder %s115, %s116
      %p125 = scmp.eq.s32.totalorder %s21, 0
      %p126 = por %p124, %p125
      %p127 = scmp.ne.s32.totalorder %s115, %s116
      %p128 = scmp.eq.s32.totalorder %s22, 1
      %p129 = por %p127, %p128
      %p131 = scmp.ne.s32.totalorder %s116, %s130
      %p132 = scmp.eq.s32.totalorder %s22, 0
      %p133 = por %p131, %p132
      %s135 = sadd.s32 %s134, 1
      %p138 = scmp.eq.s32.totalorder %s16, 1
      %p139 = scmp.ne.s32.totalorder %s134, %s136
      %p140 = scmp.eq.s32.totalorder %s16, 0
      %p141 = por %p139, %p140
      %p142 = scmp.ne.s32.totalorder %s134, %s136
      %p143 = scmp.eq.s32.totalorder %s21, 1
      %p144 = por %p142, %p143
      %p145 = scmp.ne.s32.totalorder %s136, %s137
      %p146 = scmp.eq.s32.totalorder %s21, 0
      %p147 = por %p145, %p146
      %p148 = scmp.ne.s32.totalorder %s136, %s137
      %p149 = scmp.eq.s32.totalorder %s22, 1
      %p150 = por %p148, %p149
      %p152 = scmp.ne.s32.totalorder %s137, %s151
      %p153 = scmp.eq.s32.totalorder %s22, 0
      %p154 = por %p152, %p153
      %s156 = sadd.s32 %s155, 1
      %p159 = scmp.eq.s32.totalorder %s16, 1
      %p160 = scmp.ne.s32.totalorder %s155, %s157
      %p161 = scmp.eq.s32.totalorder %s16, 0
      %p162 = por %p160, %p161
      %p163 = scmp.ne.s32.totalorder %s155, %s157
      %p164 = scmp.eq.s32.totalorder %s21, 1
      %p165 = por %p163, %p164
      %p166 = scmp.ne.s32.totalorder %s157, %s158
      %p167 = scmp.eq.s32.totalorder %s21, 0
      %p168 = por %p166, %p167
      %p169 = scmp.ne.s32.totalorder %s157, %s158
      %p170 = scmp.eq.s32.totalorder %s22, 1
      %p171 = por %p169, %p170
      %p173 = scmp.ne.s32.totalorder %s158, %s172
      %p174 = scmp.eq.s32.totalorder %s22, 0
      %p175 = por %p173, %p174
      %s176 = ssub.s32 %s16, %s23
      %p177 = scmp.eq.s32.totalorder %s176, 0
      %s179 = sadd.s32 %s178, 1
      %s180 = scalar_select %p177, %s178, %s179
      %p183 = pneg %p177
      %p184 = scmp.eq.s32.totalorder %s16, 1
      %p185 = por %p183, %p184
      %p186 = scmp.ne.s32.totalorder %s178, %s181
      %p187 = scmp.eq.s32.totalorder %s16, 0
      %p188 = por %p186, %p187
      %p189 = scmp.ne.s32.totalorder %s178, %s181
      %p190 = scmp.eq.s32.totalorder %s21, 1
      %p191 = por %p189, %p190
      %p192 = scmp.ne.s32.totalorder %s181, %s182
      %p193 = scmp.eq.s32.totalorder %s21, 0
      %p194 = por %p192, %p193
      %p195 = scmp.ne.s32.totalorder %s181, %s182
      %p196 = scmp.eq.s32.totalorder %s22, 1
      %p197 = por %p195, %p196
      %p199 = scmp.ne.s32.totalorder %s182, %s198
      %p200 = scmp.eq.s32.totalorder %s22, 0
      %p201 = por %p199, %p200
      %p202 = scmp.le.s32.totalorder 1, %s16
      %p203 = scmp.lt.s32.totalorder %s16, 3
      %p204 = pnand %p202, %p203
      %p205 = pneg %p204
      // Predicated region
      $region9: #{tpu_custom_call.1} parent=5 // pred_check
        _
      $region10: #{tpu_custom_call.1} parent=5 // pred_check_branch
        %207 = sbr.rel (%p204) target = $region12
      $region11: #{tpu_custom_call.1} parent=5 // pred_region
        %s208 = ssub.s32 %s16, 1
        // Predicated region
        $region13: #{tpu_custom_call.1} parent=11 // pred_check
          %p209 = pneg %p63
        $region14: #{tpu_custom_call.1} parent=11 // pred_check_branch
          %211 = sbr.rel (%p209) target = $region16
        $region15: #{tpu_custom_call.1} parent=11 // pred_region
          _
        $region16: #{tpu_custom_call.1} parent=11 // pred_fallthru
          _
        // Predicated region
        $region17: #{tpu_custom_call.1} parent=11 // pred_check
          %p212 = pneg %p84
        $region18: #{tpu_custom_call.1} parent=11 // pred_check_branch
          %214 = sbr.rel (%p212) target = $region20
        $region19: #{tpu_custom_call.1} parent=11 // pred_region
          _
        $region20: #{tpu_custom_call.1} parent=11 // pred_fallthru
          _
        // Predicated region
        $region21: #{tpu_custom_call.1} parent=11 // pred_check
          %p215 = pneg %p105
        $region22: #{tpu_custom_call.1} parent=11 // pred_check_branch
          %217 = sbr.rel (%p215) target = $region24
        $region23: #{tpu_custom_call.1} parent=11 // pred_region
          _
        $region24: #{tpu_custom_call.1} parent=11 // pred_fallthru
          _
        // Predicated region
        $region25: #{tpu_custom_call.1} parent=11 // pred_check
          %p218 = pneg %p126
        $region26: #{tpu_custom_call.1} parent=11 // pred_check_branch
          %220 = sbr.rel (%p218) target = $region28
        $region27: #{tpu_custom_call.1} parent=11 // pred_region
          _
        $region28: #{tpu_custom_call.1} parent=11 // pred_fallthru
          _
        // Predicated region
        $region29: #{tpu_custom_call.1} parent=11 // pred_check
          %p221 = pneg %p147
        $region30: #{tpu_custom_call.1} parent=11 // pred_check_branch
          %223 = sbr.rel (%p221) target = $region32
        $region31: #{tpu_custom_call.1} parent=11 // pred_region
          _
        $region32: #{tpu_custom_call.1} parent=11 // pred_fallthru
          _
        // Predicated region
        $region33: #{tpu_custom_call.1} parent=11 // pred_check
          %p224 = pneg %p168
        $region34: #{tpu_custom_call.1} parent=11 // pred_check_branch
          %226 = sbr.rel (%p224) target = $region36
        $region35: #{tpu_custom_call.1} parent=11 // pred_region
          _
        $region36: #{tpu_custom_call.1} parent=11 // pred_fallthru
          _
      $region12: #{tpu_custom_call.1} parent=5 // pred_fallthru
        _
      %p227 = scmp.lt.s32.totalorder %s16, 2
      // Predicated region
      $region37: #{tpu_custom_call.1} parent=5 // pred_check
        %p228 = pneg %p227
      $region38: #{tpu_custom_call.1} parent=5 // pred_check_branch
        %230 = sbr.rel (%p228) target = $region40
      $region39: #{tpu_custom_call.1} parent=5 // pred_region
        // Predicated region
        $region41: #{tpu_custom_call.1} parent=39 // pred_check
          %p231 = pneg %p36
        $region42: #{tpu_custom_call.1} parent=39 // pred_check_branch
          %233 = sbr.rel (%p231) target = $region44
        $region43: #{tpu_custom_call.1} parent=39 // pred_region
          %p234 = scmp.lt.s32.totalorder %s16, 1
          %s235 = scalar_select %p234, %s16, 1
          %s236 = smul.addr %s235, 2
          %s237 = smul.addr %s236, 4
          %s238 = scalar_lea.vmem %s0, %s237
        $region44: #{tpu_custom_call.1} parent=39 // pred_fallthru
          _
      $region40: #{tpu_custom_call.1} parent=5 // pred_fallthru
        _
      %p239 = scmp.le.s32.totalorder 1, %s16
      %p240 = scmp.lt.s32.totalorder %s16, 3
      %p241 = pnand %p239, %p240
      %p242 = pneg %p241
      // Predicated region
      $region45: #{tpu_custom_call.1} parent=5 // pred_check
        _
      $region46: #{tpu_custom_call.1} parent=5 // pred_check_branch
        %244 = sbr.rel (%p241) target = $region48
      $region47: #{tpu_custom_call.1} parent=5 // pred_region
        %s245 = ssub.s32 %s16, 1
        %p246 = scmp.lt.s32.totalorder %s21, 1
        %s247 = scalar_select %p246, %s21, 1
        %s248 = smul.addr %s247, 2
        %s249 = smul.addr %s248, 4
        %s250 = scalar_lea.vmem %s0, %s249
        %p251 = pneg %p42
        %p252 = pneg %p39
        %p253 = pneg %p63
        %p254 = pneg %p60
        %p255 = pneg %p84
        %p256 = pneg %p81
        %p257 = pneg %p105
        %p258 = pneg %p102
        %p259 = pneg %p126
        %p260 = pneg %p123
        %p261 = pneg %p147
        %p262 = pneg %p144
        %p263 = pneg %p168
        %p264 = pneg %p165
        %p265 = pneg %p194
        %p266 = pneg %p191
        %s267 = sand.u32 %s181, 1
        %s268 = scalar_lea.sflag [#allocation3], %s267
        %s269 = sand.u32 %s181, 1
        %s270 = smul.addr %s269, 32
        %s271 = scalar_lea.vmem [#allocation2], %s270
        %p272 = scmp.lt.s32.totalorder %s21, 1
        %s273 = scalar_select %p272, %s21, 1
        %s274 = smul.addr %s273, 2
        %s275 = smul.addr %s274, 4
        %s276 = scalar_lea.vmem %s0, %s275
        %v277 = vld [vmem:[%s276] sm:$0xff]
        %v278 = vld [vmem:[%s5] sm:$0xff]
        %v279 = vld [vmem:[%s5 + $0x8] sm:$0xff]
        %v280 = vld [vmem:[%s6] sm:$0xf]
        %v281 = vld [vmem:[%s1] sm:$0xf]
        %283 = vset.pattern.permute.xlu0 0
        %284 = vperm.xlu0 %283, %v278
        %v285 = vpop.permute.xlu0 %284
        %v288 = vcombine.high %v277, %v277
        %vm289 = vcmask 31744
        %v291 = vsel %vm289, %v281, 0
        %vm293 = vcmask 1043456
        %v294 = vsel %vm293, %v277, 0
        %v296 = vsel %vm293, %v288, 0
        %298 = vmatprep.subr.mxu0 0.0
        %299 = vmatpush1.msra.mxu0 0.0
        %300 = vmatprep.subr.mxu0 0.0
        %301 = vmatpush1.msra.mxu0 0.0
        %302 = vmatprep.subr.mxu0 0.0
        %303 = vmatpush1.msra.mxu0 0.0
        %304 = vmatprep.subr.mxu0 0.0
        %305 = vmatpush1.msra.mxu0 0.0
        %306 = vmatprep.subr.mxu0 0.0
        %307 = vmatpush1.msra.mxu0 0.0
        %308 = vmatprep.subr.mxu0 0.0
        %309 = vmatpush1.msra.mxu0 0.0
        %310 = vmatprep.subr.mxu0 0.0
        %311 = vmatpush1.msra.mxu0 0.0
        %312 = vmatprep.subr.mxu0 0.0
        %313 = vmatpush1.msra.mxu0 0.0
        %314 = vmatprep.subr.mxu0 0.0
        %315 = vmatpush1.msra.mxu0 0.0
        %316 = vmatprep.subr.mxu0 0.0
        %317 = vmatpush1.msra.mxu0 0.0
        %318 = vmatprep.subr.mxu0 0.0
        %319 = vmatpush1.msra.mxu0 0.0
        %320 = vmatprep.subr.mxu0 0.0
        %321 = vmatpush1.msra.mxu0 0.0
        %322 = vmatprep.subr.mxu0 0.0
        %323 = vmatpush1.msra.mxu0 0.0
        %324 = vmatprep.subr.mxu0 0.0
        %325 = vmatpush1.msra.mxu0 0.0
        %326 = vmatprep.subr.mxu0 0.0
        %327 = vmatpush1.msra.mxu0 0.0
        %328 = vmatprep.subr.mxu0 %v296
        %329 = vmatpush1.msra.mxu0 %v294
        %330 = vmatprep.subr.mxu0 0.0
        %331 = vmatpush2.msra.mxu0 0.0
        %332 = vmatprep.subr.mxu0 0.0
        %333 = vmatpush2.msra.mxu0 0.0
        %334 = vmatprep.subr.mxu0 0.0
        %335 = vmatpush2.msra.mxu0 0.0
        %336 = vmatprep.subr.mxu0 0.0
        %337 = vmatpush2.msra.mxu0 0.0
        %338 = vmatprep.subr.mxu0 0.0
        %339 = vmatpush2.msra.mxu0 0.0
        %340 = vmatprep.subr.mxu0 0.0
        %341 = vmatpush2.msra.mxu0 0.0
        %342 = vmatprep.subr.mxu0 0.0
        %343 = vmatpush2.msra.mxu0 0.0
        %344 = vmatprep.subr.mxu0 0.0
        %345 = vmatpush2.msra.mxu0 0.0
        %346 = vmatprep.subr.mxu0 0.0
        %347 = vmatpush2.msra.mxu0 0.0
        %348 = vmatprep.subr.mxu0 0.0
        %349 = vmatpush2.msra.mxu0 0.0
        %350 = vmatprep.subr.mxu0 0.0
        %351 = vmatpush2.msra.mxu0 0.0
        %352 = vmatprep.subr.mxu0 0.0
        %353 = vmatpush2.msra.mxu0 0.0
        %354 = vmatprep.subr.mxu0 0.0
        %355 = vmatpush2.msra.mxu0 0.0
        %356 = vmatprep.subr.mxu0 0.0
        %357 = vmatpush2.msra.mxu0 0.0
        %358 = vmatprep.subr.mxu0 0.0
        %359 = vmatpush2.msra.mxu0 0.0
        %360 = vmatprep.subr.mxu0 0.0
        %361 = vmatpush2.msra.mxu0 0.0
        %362 = vmatprep.mubr.f32.mxu0 0.0
        %363 = vmatmul.mubr.f32.gmra.mxu0 %v291
        %v364 = vpop.f32.mrf.mxu0
        %v365 = vadd.f32 %v285, %v364
        %v366 = vpop.f32.mrf.mxu0
        %v367 = vadd.f32 %v285, %v366
        %368 = vdwg.mxu0
        %v369 = vmax.f32 %v365, 0.0
        %v370 = vmax.f32 %v367, 0.0
        %373 = vrot.lane.b32.xlu0 %v369, 1
        %v374 = vpop.permute.xlu0 %373
        %375 = vrot.lane.b32.xlu0 %v370, 1
        %v376 = vpop.permute.xlu0 %375
        %vm377 = vcmask 7168
        %v378 = vsel %vm377, %v374, %v376
        %v381 = vsel %vm377, 0.0, %v374
        %v383 = vlaneseq
        %v384 = vshrl.u32 %v383, 7
        %v385 = vsub.s32 0, %v384
        %v386 = vrot.slane %v280, %v385
        %v387 = vlaneseq
        %v388 = vshrl.u32 %v387, 7
        %v389 = vsub.s32 2, %v388
        %v390 = vrot.slane %v280, %v389
        %v393 = vlaneseq
        %v394 = vshrl.u32 %v393, 7
        %v395 = vsub.s32 0, %v394
        %v396 = vrot.slane %v386, %v395
        %v397 = vlaneseq
        %v398 = vshrl.u32 %v397, 7
        %v399 = vsub.s32 0, %v398
        %v400 = vrot.slane %v390, %v399
        %v401 = vmul.f32 %v381, %v396
        %v402 = vmul.f32 %v378, %v400
        %403 = vrot.lane.b32.xlu0 %v369, 127
        %v404 = vpop.permute.xlu0 %403
        %405 = vrot.lane.b32.xlu0 %v370, 127
        %v406 = vpop.permute.xlu0 %405
        %vm407 = vcmask 1039360
        %v408 = vsel %vm407, %v404, %v406
        %v411 = vsel %vm407, %v406, 0.0
        %v412 = vlaneseq
        %v413 = vshrl.u32 %v412, 7
        %v414 = vsub.s32 1, %v413
        %v415 = vrot.slane %v280, %v414
        %v416 = vlaneseq
        %v417 = vshrl.u32 %v416, 7
        %v418 = vsub.s32 3, %v417
        %v419 = vrot.slane %v280, %v418
        %v422 = vlaneseq
        %v423 = vshrl.u32 %v422, 7
        %v424 = vsub.s32 1, %v423
        %v425 = vrot.slane %v415, %v424
        %v426 = vlaneseq
        %v427 = vshrl.u32 %v426, 7
        %v428 = vsub.s32 1, %v427
        %v429 = vrot.slane %v419, %v428
        %v430 = vmul.f32 %v408, %v425
        %v431 = vmul.f32 %v411, %v429
        %v432 = vld [vmem:[%s2] sm:$0xf]
        %435 = vrot.lane.b32.xlu0 %v401, 16
        %v436 = vpop.permute.xlu0 %435
        %437 = vrot.lane.b32.xlu0 %v402, 16
        %v438 = vpop.permute.xlu0 %437
        %vm439 = vcmask 130048
        %v440 = vsel %vm439, %v436, %v438
        %v442 = vsel %vm439, 0.0, %v436
        %443 = vrot.lane.b32.xlu0 %v369, 16
        %v444 = vpop.permute.xlu0 %443
        %445 = vrot.lane.b32.xlu0 %v370, 16
        %v446 = vpop.permute.xlu0 %445
        %v447 = vsel %vm439, %v444, %v446
        %v449 = vsel %vm439, 0.0, %v444
        %451 = vrot.lane.b32.xlu0 %v432, 124
        %v452 = vpop.permute.xlu0 %451
        %v453 = vsel %vm289, %v452, 0
        %v456 = vsel %vm293, %v449, 0
        %v458 = vsel %vm293, %v447, 0
        %460 = vmatprep.subr.mxu0 0.0
        %461 = vmatpush1.msra.mxu0 0.0
        %462 = vmatprep.subr.mxu0 0.0
        %463 = vmatpush1.msra.mxu0 0.0
        %464 = vmatprep.subr.mxu0 0.0
        %465 = vmatpush1.msra.mxu0 0.0
        %466 = vmatprep.subr.mxu0 0.0
        %467 = vmatpush1.msra.mxu0 0.0
        %468 = vmatprep.subr.mxu0 0.0
        %469 = vmatpush1.msra.mxu0 0.0
        %470 = vmatprep.subr.mxu0 0.0
        %471 = vmatpush1.msra.mxu0 0.0
        %472 = vmatprep.subr.mxu0 0.0
        %473 = vmatpush1.msra.mxu0 0.0
        %474 = vmatprep.subr.mxu0 0.0
        %475 = vmatpush1.msra.mxu0 0.0
        %476 = vmatprep.subr.mxu0 0.0
        %477 = vmatpush1.msra.mxu0 0.0
        %478 = vmatprep.subr.mxu0 0.0
        %479 = vmatpush1.msra.mxu0 0.0
        %480 = vmatprep.subr.mxu0 0.0
        %481 = vmatpush1.msra.mxu0 0.0
        %482 = vmatprep.subr.mxu0 0.0
        %483 = vmatpush1.msra.mxu0 0.0
        %484 = vmatprep.subr.mxu0 0.0
        %485 = vmatpush1.msra.mxu0 0.0
        %486 = vmatprep.subr.mxu0 0.0
        %487 = vmatpush1.msra.mxu0 0.0
        %488 = vmatprep.subr.mxu0 0.0
        %489 = vmatpush1.msra.mxu0 0.0
        %490 = vmatprep.subr.mxu0 %v458
        %491 = vmatpush1.msra.mxu0 %v456
        %492 = vmatprep.subr.mxu0 0.0
        %493 = vmatpush2.msra.mxu0 0.0
        %494 = vmatprep.subr.mxu0 0.0
        %495 = vmatpush2.msra.mxu0 0.0
        %496 = vmatprep.subr.mxu0 0.0
        %497 = vmatpush2.msra.mxu0 0.0
        %498 = vmatprep.subr.mxu0 0.0
        %499 = vmatpush2.msra.mxu0 0.0
        %500 = vmatprep.subr.mxu0 0.0
        %501 = vmatpush2.msra.mxu0 0.0
        %502 = vmatprep.subr.mxu0 0.0
        %503 = vmatpush2.msra.mxu0 0.0
        %504 = vmatprep.subr.mxu0 0.0
        %505 = vmatpush2.msra.mxu0 0.0
        %506 = vmatprep.subr.mxu0 0.0
        %507 = vmatpush2.msra.mxu0 0.0
        %508 = vmatprep.subr.mxu0 0.0
        %509 = vmatpush2.msra.mxu0 0.0
        %510 = vmatprep.subr.mxu0 0.0
        %511 = vmatpush2.msra.mxu0 0.0
        %512 = vmatprep.subr.mxu0 0.0
        %513 = vmatpush2.msra.mxu0 0.0
        %514 = vmatprep.subr.mxu0 0.0
        %515 = vmatpush2.msra.mxu0 0.0
        %516 = vmatprep.subr.mxu0 0.0
        %517 = vmatpush2.msra.mxu0 0.0
        %518 = vmatprep.subr.mxu0 0.0
        %519 = vmatpush2.msra.mxu0 0.0
        %520 = vmatprep.subr.mxu0 0.0
        %521 = vmatpush2.msra.mxu0 0.0
        %522 = vmatprep.subr.mxu0 0.0
        %523 = vmatpush2.msra.mxu0 0.0
        %524 = vmatprep.mubr.f32.mxu0 0.0
        %525 = vmatmul.mubr.f32.gmra.mxu0 %v453
        %v526 = vpop.f32.mrf.mxu0
        %v527 = vadd.f32 0.0, %v526
        %v528 = vpop.f32.mrf.mxu0
        %v529 = vadd.f32 0.0, %v528
        %530 = vdwg.mxu0
        %v531 = vsel %vm289, %v432, 0
        %v534 = vsel %vm293, %v442, 0
        %v536 = vsel %vm293, %v440, 0
        %538 = vmatprep.subr.mxu0 0.0
        %539 = vmatpush1.msra.mxu0 0.0
        %540 = vmatprep.subr.mxu0 0.0
        %541 = vmatpush1.msra.mxu0 0.0
        %542 = vmatprep.subr.mxu0 0.0
        %543 = vmatpush1.msra.mxu0 0.0
        %544 = vmatprep.subr.mxu0 0.0
        %545 = vmatpush1.msra.mxu0 0.0
        %546 = vmatprep.subr.mxu0 0.0
        %547 = vmatpush1.msra.mxu0 0.0
        %548 = vmatprep.subr.mxu0 0.0
        %549 = vmatpush1.msra.mxu0 0.0
        %550 = vmatprep.subr.mxu0 0.0
        %551 = vmatpush1.msra.mxu0 0.0
        %552 = vmatprep.subr.mxu0 0.0
        %553 = vmatpush1.msra.mxu0 0.0
        %554 = vmatprep.subr.mxu0 0.0
        %555 = vmatpush1.msra.mxu0 0.0
        %556 = vmatprep.subr.mxu0 0.0
        %557 = vmatpush1.msra.mxu0 0.0
        %558 = vmatprep.subr.mxu0 0.0
        %559 = vmatpush1.msra.mxu0 0.0
        %560 = vmatprep.subr.mxu0 0.0
        %561 = vmatpush1.msra.mxu0 0.0
        %562 = vmatprep.subr.mxu0 0.0
        %563 = vmatpush1.msra.mxu0 0.0
        %564 = vmatprep.subr.mxu0 0.0
        %565 = vmatpush1.msra.mxu0 0.0
        %566 = vmatprep.subr.mxu0 0.0
        %567 = vmatpush1.msra.mxu0 0.0
        %568 = vmatprep.subr.mxu0 %v536
        %569 = vmatpush1.msra.mxu0 %v534
        %570 = vmatprep.subr.mxu0 0.0
        %571 = vmatpush2.msra.mxu0 0.0
        %572 = vmatprep.subr.mxu0 0.0
        %573 = vmatpush2.msra.mxu0 0.0
        %574 = vmatprep.subr.mxu0 0.0
        %575 = vmatpush2.msra.mxu0 0.0
        %576 = vmatprep.subr.mxu0 0.0
        %577 = vmatpush2.msra.mxu0 0.0
        %578 = vmatprep.subr.mxu0 0.0
        %579 = vmatpush2.msra.mxu0 0.0
        %580 = vmatprep.subr.mxu0 0.0
        %581 = vmatpush2.msra.mxu0 0.0
        %582 = vmatprep.subr.mxu0 0.0
        %583 = vmatpush2.msra.mxu0 0.0
        %584 = vmatprep.subr.mxu0 0.0
        %585 = vmatpush2.msra.mxu0 0.0
        %586 = vmatprep.subr.mxu0 0.0
        %587 = vmatpush2.msra.mxu0 0.0
        %588 = vmatprep.subr.mxu0 0.0
        %589 = vmatpush2.msra.mxu0 0.0
        %590 = vmatprep.subr.mxu0 0.0
        %591 = vmatpush2.msra.mxu0 0.0
        %592 = vmatprep.subr.mxu0 0.0
        %593 = vmatpush2.msra.mxu0 0.0
        %594 = vmatprep.subr.mxu0 0.0
        %595 = vmatpush2.msra.mxu0 0.0
        %596 = vmatprep.subr.mxu0 0.0
        %597 = vmatpush2.msra.mxu0 0.0
        %598 = vmatprep.subr.mxu0 0.0
        %599 = vmatpush2.msra.mxu0 0.0
        %600 = vmatprep.subr.mxu0 0.0
        %601 = vmatpush2.msra.mxu0 0.0
        %602 = vmatprep.mubr.f32.mxu0 0.0
        %603 = vmatmul.mubr.f32.gmra.mxu0 %v531
        %v604 = vpop.f32.mrf.mxu0
        %v605 = vadd.f32 %v527, %v604
        %v606 = vpop.f32.mrf.mxu0
        %v607 = vadd.f32 %v529, %v606
        %608 = vdwg.mxu0
        %611 = vrot.lane.b32.xlu0 %v430, 16
        %v612 = vpop.permute.xlu0 %611
        %613 = vrot.lane.b32.xlu0 %v431, 16
        %v614 = vpop.permute.xlu0 %613
        %v615 = vsel %vm439, %v612, %v614
        %v617 = vsel %vm439, 0.0, %v612
        %618 = vrot.lane.b32.xlu0 %v432, 120
        %v619 = vpop.permute.xlu0 %618
        %v620 = vsel %vm289, %v619, 0
        %v623 = vsel %vm293, %v617, 0
        %v625 = vsel %vm293, %v615, 0
        %627 = vmatprep.subr.mxu0 0.0
        %628 = vmatpush1.msra.mxu0 0.0
        %629 = vmatprep.subr.mxu0 0.0
        %630 = vmatpush1.msra.mxu0 0.0
        %631 = vmatprep.subr.mxu0 0.0
        %632 = vmatpush1.msra.mxu0 0.0
        %633 = vmatprep.subr.mxu0 0.0
        %634 = vmatpush1.msra.mxu0 0.0
        %635 = vmatprep.subr.mxu0 0.0
        %636 = vmatpush1.msra.mxu0 0.0
        %637 = vmatprep.subr.mxu0 0.0
        %638 = vmatpush1.msra.mxu0 0.0
        %639 = vmatprep.subr.mxu0 0.0
        %640 = vmatpush1.msra.mxu0 0.0
        %641 = vmatprep.subr.mxu0 0.0
        %642 = vmatpush1.msra.mxu0 0.0
        %643 = vmatprep.subr.mxu0 0.0
        %644 = vmatpush1.msra.mxu0 0.0
        %645 = vmatprep.subr.mxu0 0.0
        %646 = vmatpush1.msra.mxu0 0.0
        %647 = vmatprep.subr.mxu0 0.0
        %648 = vmatpush1.msra.mxu0 0.0
        %649 = vmatprep.subr.mxu0 0.0
        %650 = vmatpush1.msra.mxu0 0.0
        %651 = vmatprep.subr.mxu0 0.0
        %652 = vmatpush1.msra.mxu0 0.0
        %653 = vmatprep.subr.mxu0 0.0
        %654 = vmatpush1.msra.mxu0 0.0
        %655 = vmatprep.subr.mxu0 0.0
        %656 = vmatpush1.msra.mxu0 0.0
        %657 = vmatprep.subr.mxu0 %v625
        %658 = vmatpush1.msra.mxu0 %v623
        %659 = vmatprep.subr.mxu0 0.0
        %660 = vmatpush2.msra.mxu0 0.0
        %661 = vmatprep.subr.mxu0 0.0
        %662 = vmatpush2.msra.mxu0 0.0
        %663 = vmatprep.subr.mxu0 0.0
        %664 = vmatpush2.msra.mxu0 0.0
        %665 = vmatprep.subr.mxu0 0.0
        %666 = vmatpush2.msra.mxu0 0.0
        %667 = vmatprep.subr.mxu0 0.0
        %668 = vmatpush2.msra.mxu0 0.0
        %669 = vmatprep.subr.mxu0 0.0
        %670 = vmatpush2.msra.mxu0 0.0
        %671 = vmatprep.subr.mxu0 0.0
        %672 = vmatpush2.msra.mxu0 0.0
        %673 = vmatprep.subr.mxu0 0.0
        %674 = vmatpush2.msra.mxu0 0.0
        %675 = vmatprep.subr.mxu0 0.0
        %676 = vmatpush2.msra.mxu0 0.0
        %677 = vmatprep.subr.mxu0 0.0
        %678 = vmatpush2.msra.mxu0 0.0
        %679 = vmatprep.subr.mxu0 0.0
        %680 = vmatpush2.msra.mxu0 0.0
        %681 = vmatprep.subr.mxu0 0.0
        %682 = vmatpush2.msra.mxu0 0.0
        %683 = vmatprep.subr.mxu0 0.0
        %684 = vmatpush2.msra.mxu0 0.0
        %685 = vmatprep.subr.mxu0 0.0
        %686 = vmatpush2.msra.mxu0 0.0
        %687 = vmatprep.subr.mxu0 0.0
        %688 = vmatpush2.msra.mxu0 0.0
        %689 = vmatprep.subr.mxu0 0.0
        %690 = vmatpush2.msra.mxu0 0.0
        %691 = vmatprep.mubr.f32.mxu0 0.0
        %692 = vmatmul.mubr.f32.gmra.mxu0 %v620
        %v693 = vpop.f32.mrf.mxu0
        %v694 = vadd.f32 0.0, %v693
        %v695 = vpop.f32.mrf.mxu0
        %v696 = vadd.f32 0.0, %v695
        %697 = vdwg.mxu0
        %v698 = vadd.f32 %v605, %v694
        %v699 = vadd.f32 %v607, %v696
        %700 = vrot.lane.b32.xlu0 %v432, 116
        %v701 = vpop.permute.xlu0 %700
        %v702 = vsel %vm289, %v701, 0
        %v704 = vsel %vm293, %v401, 0
        %v706 = vsel %vm293, %v402, 0
        %708 = vmatprep.subr.mxu0 0.0
        %709 = vmatpush1.msra.mxu0 0.0
        %710 = vmatprep.subr.mxu0 0.0
        %711 = vmatpush1.msra.mxu0 0.0
        %712 = vmatprep.subr.mxu0 0.0
        %713 = vmatpush1.msra.mxu0 0.0
        %714 = vmatprep.subr.mxu0 0.0
        %715 = vmatpush1.msra.mxu0 0.0
        %716 = vmatprep.subr.mxu0 0.0
        %717 = vmatpush1.msra.mxu0 0.0
        %718 = vmatprep.subr.mxu0 0.0
        %719 = vmatpush1.msra.mxu0 0.0
        %720 = vmatprep.subr.mxu0 0.0
        %721 = vmatpush1.msra.mxu0 0.0
        %722 = vmatprep.subr.mxu0 0.0
        %723 = vmatpush1.msra.mxu0 0.0
        %724 = vmatprep.subr.mxu0 0.0
        %725 = vmatpush1.msra.mxu0 0.0
        %726 = vmatprep.subr.mxu0 0.0
        %727 = vmatpush1.msra.mxu0 0.0
        %728 = vmatprep.subr.mxu0 0.0
        %729 = vmatpush1.msra.mxu0 0.0
        %730 = vmatprep.subr.mxu0 0.0
        %731 = vmatpush1.msra.mxu0 0.0
        %732 = vmatprep.subr.mxu0 0.0
        %733 = vmatpush1.msra.mxu0 0.0
        %734 = vmatprep.subr.mxu0 0.0
        %735 = vmatpush1.msra.mxu0 0.0
        %736 = vmatprep.subr.mxu0 0.0
        %737 = vmatpush1.msra.mxu0 0.0
        %738 = vmatprep.subr.mxu0 %v706
        %739 = vmatpush1.msra.mxu0 %v704
        %740 = vmatprep.subr.mxu0 0.0
        %741 = vmatpush2.msra.mxu0 0.0
        %742 = vmatprep.subr.mxu0 0.0
        %743 = vmatpush2.msra.mxu0 0.0
        %744 = vmatprep.subr.mxu0 0.0
        %745 = vmatpush2.msra.mxu0 0.0
        %746 = vmatprep.subr.mxu0 0.0
        %747 = vmatpush2.msra.mxu0 0.0
        %748 = vmatprep.subr.mxu0 0.0
        %749 = vmatpush2.msra.mxu0 0.0
        %750 = vmatprep.subr.mxu0 0.0
        %751 = vmatpush2.msra.mxu0 0.0
        %752 = vmatprep.subr.mxu0 0.0
        %753 = vmatpush2.msra.mxu0 0.0
        %754 = vmatprep.subr.mxu0 0.0
        %755 = vmatpush2.msra.mxu0 0.0
        %756 = vmatprep.subr.mxu0 0.0
        %757 = vmatpush2.msra.mxu0 0.0
        %758 = vmatprep.subr.mxu0 0.0
        %759 = vmatpush2.msra.mxu0 0.0
        %760 = vmatprep.subr.mxu0 0.0
        %761 = vmatpush2.msra.mxu0 0.0
        %762 = vmatprep.subr.mxu0 0.0
        %763 = vmatpush2.msra.mxu0 0.0
        %764 = vmatprep.subr.mxu0 0.0
        %765 = vmatpush2.msra.mxu0 0.0
        %766 = vmatprep.subr.mxu0 0.0
        %767 = vmatpush2.msra.mxu0 0.0
        %768 = vmatprep.subr.mxu0 0.0
        %769 = vmatpush2.msra.mxu0 0.0
        %770 = vmatprep.subr.mxu0 0.0
        %771 = vmatpush2.msra.mxu0 0.0
        %772 = vmatprep.mubr.f32.mxu0 0.0
        %773 = vmatmul.mubr.f32.gmra.mxu0 %v702
        %v774 = vpop.f32.mrf.mxu0
        %v775 = vadd.f32 0.0, %v774
        %v776 = vpop.f32.mrf.mxu0
        %v777 = vadd.f32 0.0, %v776
        %778 = vdwg.mxu0
        %v779 = vadd.f32 %v698, %v775
        %v780 = vadd.f32 %v699, %v777
        %781 = vrot.lane.b32.xlu0 %v432, 112
        %v782 = vpop.permute.xlu0 %781
        %v783 = vsel %vm289, %v782, 0
        %v785 = vsel %vm293, %v369, 0
        %v787 = vsel %vm293, %v370, 0
        %789 = vmatprep.subr.mxu0 0.0
        %790 = vmatpush1.msra.mxu0 0.0
        %791 = vmatprep.subr.mxu0 0.0
        %792 = vmatpush1.msra.mxu0 0.0
        %793 = vmatprep.subr.mxu0 0.0
        %794 = vmatpush1.msra.mxu0 0.0
        %795 = vmatprep.subr.mxu0 0.0
        %796 = vmatpush1.msra.mxu0 0.0
        %797 = vmatprep.subr.mxu0 0.0
        %798 = vmatpush1.msra.mxu0 0.0
        %799 = vmatprep.subr.mxu0 0.0
        %800 = vmatpush1.msra.mxu0 0.0
        %801 = vmatprep.subr.mxu0 0.0
        %802 = vmatpush1.msra.mxu0 0.0
        %803 = vmatprep.subr.mxu0 0.0
        %804 = vmatpush1.msra.mxu0 0.0
        %805 = vmatprep.subr.mxu0 0.0
        %806 = vmatpush1.msra.mxu0 0.0
        %807 = vmatprep.subr.mxu0 0.0
        %808 = vmatpush1.msra.mxu0 0.0
        %809 = vmatprep.subr.mxu0 0.0
        %810 = vmatpush1.msra.mxu0 0.0
        %811 = vmatprep.subr.mxu0 0.0
        %812 = vmatpush1.msra.mxu0 0.0
        %813 = vmatprep.subr.mxu0 0.0
        %814 = vmatpush1.msra.mxu0 0.0
        %815 = vmatprep.subr.mxu0 0.0
        %816 = vmatpush1.msra.mxu0 0.0
        %817 = vmatprep.subr.mxu0 0.0
        %818 = vmatpush1.msra.mxu0 0.0
        %819 = vmatprep.subr.mxu0 %v787
        %820 = vmatpush1.msra.mxu0 %v785
        %821 = vmatprep.subr.mxu0 0.0
        %822 = vmatpush2.msra.mxu0 0.0
        %823 = vmatprep.subr.mxu0 0.0
        %824 = vmatpush2.msra.mxu0 0.0
        %825 = vmatprep.subr.mxu0 0.0
        %826 = vmatpush2.msra.mxu0 0.0
        %827 = vmatprep.subr.mxu0 0.0
        %828 = vmatpush2.msra.mxu0 0.0
        %829 = vmatprep.subr.mxu0 0.0
        %830 = vmatpush2.msra.mxu0 0.0
        %831 = vmatprep.subr.mxu0 0.0
        %832 = vmatpush2.msra.mxu0 0.0
        %833 = vmatprep.subr.mxu0 0.0
        %834 = vmatpush2.msra.mxu0 0.0
        %835 = vmatprep.subr.mxu0 0.0
        %836 = vmatpush2.msra.mxu0 0.0
        %837 = vmatprep.subr.mxu0 0.0
        %838 = vmatpush2.msra.mxu0 0.0
        %839 = vmatprep.subr.mxu0 0.0
        %840 = vmatpush2.msra.mxu0 0.0
        %841 = vmatprep.subr.mxu0 0.0
        %842 = vmatpush2.msra.mxu0 0.0
        %843 = vmatprep.subr.mxu0 0.0
        %844 = vmatpush2.msra.mxu0 0.0
        %845 = vmatprep.subr.mxu0 0.0
        %846 = vmatpush2.msra.mxu0 0.0
        %847 = vmatprep.subr.mxu0 0.0
        %848 = vmatpush2.msra.mxu0 0.0
        %849 = vmatprep.subr.mxu0 0.0
        %850 = vmatpush2.msra.mxu0 0.0
        %851 = vmatprep.subr.mxu0 0.0
        %852 = vmatpush2.msra.mxu0 0.0
        %853 = vmatprep.mubr.f32.mxu0 0.0
        %854 = vmatmul.mubr.f32.gmra.mxu0 %v783
        %v855 = vpop.f32.mrf.mxu0
        %v856 = vadd.f32 0.0, %v855
        %v857 = vpop.f32.mrf.mxu0
        %v858 = vadd.f32 0.0, %v857
        %859 = vdwg.mxu0
        %v860 = vadd.f32 %v779, %v856
        %v861 = vadd.f32 %v780, %v858
        %862 = vrot.lane.b32.xlu0 %v432, 108
        %v863 = vpop.permute.xlu0 %862
        %v864 = vsel %vm289, %v863, 0
        %v866 = vsel %vm293, %v430, 0
        %v868 = vsel %vm293, %v431, 0
        %870 = vmatprep.subr.mxu0 0.0
        %871 = vmatpush1.msra.mxu0 0.0
        %872 = vmatprep.subr.mxu0 0.0
        %873 = vmatpush1.msra.mxu0 0.0
        %874 = vmatprep.subr.mxu0 0.0
        %875 = vmatpush1.msra.mxu0 0.0
        %876 = vmatprep.subr.mxu0 0.0
        %877 = vmatpush1.msra.mxu0 0.0
        %878 = vmatprep.subr.mxu0 0.0
        %879 = vmatpush1.msra.mxu0 0.0
        %880 = vmatprep.subr.mxu0 0.0
        %881 = vmatpush1.msra.mxu0 0.0
        %882 = vmatprep.subr.mxu0 0.0
        %883 = vmatpush1.msra.mxu0 0.0
        %884 = vmatprep.subr.mxu0 0.0
        %885 = vmatpush1.msra.mxu0 0.0
        %886 = vmatprep.subr.mxu0 0.0
        %887 = vmatpush1.msra.mxu0 0.0
        %888 = vmatprep.subr.mxu0 0.0
        %889 = vmatpush1.msra.mxu0 0.0
        %890 = vmatprep.subr.mxu0 0.0
        %891 = vmatpush1.msra.mxu0 0.0
        %892 = vmatprep.subr.mxu0 0.0
        %893 = vmatpush1.msra.mxu0 0.0
        %894 = vmatprep.subr.mxu0 0.0
        %895 = vmatpush1.msra.mxu0 0.0
        %896 = vmatprep.subr.mxu0 0.0
        %897 = vmatpush1.msra.mxu0 0.0
        %898 = vmatprep.subr.mxu0 0.0
        %899 = vmatpush1.msra.mxu0 0.0
        %900 = vmatprep.subr.mxu0 %v868
        %901 = vmatpush1.msra.mxu0 %v866
        %902 = vmatprep.subr.mxu0 0.0
        %903 = vmatpush2.msra.mxu0 0.0
        %904 = vmatprep.subr.mxu0 0.0
        %905 = vmatpush2.msra.mxu0 0.0
        %906 = vmatprep.subr.mxu0 0.0
        %907 = vmatpush2.msra.mxu0 0.0
        %908 = vmatprep.subr.mxu0 0.0
        %909 = vmatpush2.msra.mxu0 0.0
        %910 = vmatprep.subr.mxu0 0.0
        %911 = vmatpush2.msra.mxu0 0.0
        %912 = vmatprep.subr.mxu0 0.0
        %913 = vmatpush2.msra.mxu0 0.0
        %914 = vmatprep.subr.mxu0 0.0
        %915 = vmatpush2.msra.mxu0 0.0
        %916 = vmatprep.subr.mxu0 0.0
        %917 = vmatpush2.msra.mxu0 0.0
        %918 = vmatprep.subr.mxu0 0.0
        %919 = vmatpush2.msra.mxu0 0.0
        %920 = vmatprep.subr.mxu0 0.0
        %921 = vmatpush2.msra.mxu0 0.0
        %922 = vmatprep.subr.mxu0 0.0
        %923 = vmatpush2.msra.mxu0 0.0
        %924 = vmatprep.subr.mxu0 0.0
        %925 = vmatpush2.msra.mxu0 0.0
        %926 = vmatprep.subr.mxu0 0.0
        %927 = vmatpush2.msra.mxu0 0.0
        %928 = vmatprep.subr.mxu0 0.0
        %929 = vmatpush2.msra.mxu0 0.0
        %930 = vmatprep.subr.mxu0 0.0
        %931 = vmatpush2.msra.mxu0 0.0
        %932 = vmatprep.subr.mxu0 0.0
        %933 = vmatpush2.msra.mxu0 0.0
        %934 = vmatprep.mubr.f32.mxu0 0.0
        %935 = vmatmul.mubr.f32.gmra.mxu0 %v864
        %v936 = vpop.f32.mrf.mxu0
        %v937 = vadd.f32 0.0, %v936
        %v938 = vpop.f32.mrf.mxu0
        %v939 = vadd.f32 0.0, %v938
        %940 = vdwg.mxu0
        %v941 = vadd.f32 %v860, %v937
        %v942 = vadd.f32 %v861, %v939
        %943 = vrot.lane.b32.xlu0 %v401, 112
        %v944 = vpop.permute.xlu0 %943
        %945 = vrot.lane.b32.xlu0 %v402, 112
        %v946 = vpop.permute.xlu0 %945
        %vm947 = vcmask 916480
        %v948 = vsel %vm947, %v944, %v946
        %v950 = vsel %vm947, %v946, 0.0
        %951 = vrot.lane.b32.xlu0 %v432, 104
        %v952 = vpop.permute.xlu0 %951
        %v953 = vsel %vm289, %v952, 0
        %v955 = vsel %vm293, %v948, 0
        %v958 = vsel %vm293, %v950, 0
        %960 = vmatprep.subr.mxu0 0.0
        %961 = vmatpush1.msra.mxu0 0.0
        %962 = vmatprep.subr.mxu0 0.0
        %963 = vmatpush1.msra.mxu0 0.0
        %964 = vmatprep.subr.mxu0 0.0
        %965 = vmatpush1.msra.mxu0 0.0
        %966 = vmatprep.subr.mxu0 0.0
        %967 = vmatpush1.msra.mxu0 0.0
        %968 = vmatprep.subr.mxu0 0.0
        %969 = vmatpush1.msra.mxu0 0.0
        %970 = vmatprep.subr.mxu0 0.0
        %971 = vmatpush1.msra.mxu0 0.0
        %972 = vmatprep.subr.mxu0 0.0
        %973 = vmatpush1.msra.mxu0 0.0
        %974 = vmatprep.subr.mxu0 0.0
        %975 = vmatpush1.msra.mxu0 0.0
        %976 = vmatprep.subr.mxu0 0.0
        %977 = vmatpush1.msra.mxu0 0.0
        %978 = vmatprep.subr.mxu0 0.0
        %979 = vmatpush1.msra.mxu0 0.0
        %980 = vmatprep.subr.mxu0 0.0
        %981 = vmatpush1.msra.mxu0 0.0
        %982 = vmatprep.subr.mxu0 0.0
        %983 = vmatpush1.msra.mxu0 0.0
        %984 = vmatprep.subr.mxu0 0.0
        %985 = vmatpush1.msra.mxu0 0.0
        %986 = vmatprep.subr.mxu0 0.0
        %987 = vmatpush1.msra.mxu0 0.0
        %988 = vmatprep.subr.mxu0 0.0
        %989 = vmatpush1.msra.mxu0 0.0
        %990 = vmatprep.subr.mxu0 %v958
        %991 = vmatpush1.msra.mxu0 %v955
        %992 = vmatprep.subr.mxu0 0.0
        %993 = vmatpush2.msra.mxu0 0.0
        %994 = vmatprep.subr.mxu0 0.0
        %995 = vmatpush2.msra.mxu0 0.0
        %996 = vmatprep.subr.mxu0 0.0
        %997 = vmatpush2.msra.mxu0 0.0
        %998 = vmatprep.subr.mxu0 0.0
        %999 = vmatpush2.msra.mxu0 0.0
        %1000 = vmatprep.subr.mxu0 0.0
        %1001 = vmatpush2.msra.mxu0 0.0
        %1002 = vmatprep.subr.mxu0 0.0
        %1003 = vmatpush2.msra.mxu0 0.0
        %1004 = vmatprep.subr.mxu0 0.0
        %1005 = vmatpush2.msra.mxu0 0.0
        %1006 = vmatprep.subr.mxu0 0.0
        %1007 = vmatpush2.msra.mxu0 0.0
        %1008 = vmatprep.subr.mxu0 0.0
        %1009 = vmatpush2.msra.mxu0 0.0
        %1010 = vmatprep.subr.mxu0 0.0
        %1011 = vmatpush2.msra.mxu0 0.0
        %1012 = vmatprep.subr.mxu0 0.0
        %1013 = vmatpush2.msra.mxu0 0.0
        %1014 = vmatprep.subr.mxu0 0.0
        %1015 = vmatpush2.msra.mxu0 0.0
        %1016 = vmatprep.subr.mxu0 0.0
        %1017 = vmatpush2.msra.mxu0 0.0
        %1018 = vmatprep.subr.mxu0 0.0
        %1019 = vmatpush2.msra.mxu0 0.0
        %1020 = vmatprep.subr.mxu0 0.0
        %1021 = vmatpush2.msra.mxu0 0.0
        %1022 = vmatprep.subr.mxu0 0.0
        %1023 = vmatpush2.msra.mxu0 0.0
        %1024 = vmatprep.mubr.f32.mxu0 0.0
        %1025 = vmatmul.mubr.f32.gmra.mxu0 %v953
        %v1026 = vpop.f32.mrf.mxu0
        %v1027 = vadd.f32 0.0, %v1026
        %v1028 = vpop.f32.mrf.mxu0
        %v1029 = vadd.f32 0.0, %v1028
        %1030 = vdwg.mxu0
        %v1031 = vadd.f32 %v941, %v1027
        %v1032 = vadd.f32 %v942, %v1029
        %1033 = vrot.lane.b32.xlu0 %v369, 112
        %v1034 = vpop.permute.xlu0 %1033
        %1035 = vrot.lane.b32.xlu0 %v370, 112
        %v1036 = vpop.permute.xlu0 %1035
        %v1037 = vsel %vm947, %v1034, %v1036
        %v1039 = vsel %vm947, %v1036, 0.0
        %1040 = vrot.lane.b32.xlu0 %v432, 100
        %v1041 = vpop.permute.xlu0 %1040
        %v1042 = vsel %vm289, %v1041, 0
        %v1044 = vsel %vm293, %v1037, 0
        %v1047 = vsel %vm293, %v1039, 0
        %1049 = vmatprep.subr.mxu0 0.0
        %1050 = vmatpush1.msra.mxu0 0.0
        %1051 = vmatprep.subr.mxu0 0.0
        %1052 = vmatpush1.msra.mxu0 0.0
        %1053 = vmatprep.subr.mxu0 0.0
        %1054 = vmatpush1.msra.mxu0 0.0
        %1055 = vmatprep.subr.mxu0 0.0
        %1056 = vmatpush1.msra.mxu0 0.0
        %1057 = vmatprep.subr.mxu0 0.0
        %1058 = vmatpush1.msra.mxu0 0.0
        %1059 = vmatprep.subr.mxu0 0.0
        %1060 = vmatpush1.msra.mxu0 0.0
        %1061 = vmatprep.subr.mxu0 0.0
        %1062 = vmatpush1.msra.mxu0 0.0
        %1063 = vmatprep.subr.mxu0 0.0
        %1064 = vmatpush1.msra.mxu0 0.0
        %1065 = vmatprep.subr.mxu0 0.0
        %1066 = vmatpush1.msra.mxu0 0.0
        %1067 = vmatprep.subr.mxu0 0.0
        %1068 = vmatpush1.msra.mxu0 0.0
        %1069 = vmatprep.subr.mxu0 0.0
        %1070 = vmatpush1.msra.mxu0 0.0
        %1071 = vmatprep.subr.mxu0 0.0
        %1072 = vmatpush1.msra.mxu0 0.0
        %1073 = vmatprep.subr.mxu0 0.0
        %1074 = vmatpush1.msra.mxu0 0.0
        %1075 = vmatprep.subr.mxu0 0.0
        %1076 = vmatpush1.msra.mxu0 0.0
        %1077 = vmatprep.subr.mxu0 0.0
        %1078 = vmatpush1.msra.mxu0 0.0
        %1079 = vmatprep.subr.mxu0 %v1047
        %1080 = vmatpush1.msra.mxu0 %v1044
        %1081 = vmatprep.subr.mxu0 0.0
        %1082 = vmatpush2.msra.mxu0 0.0
        %1083 = vmatprep.subr.mxu0 0.0
        %1084 = vmatpush2.msra.mxu0 0.0
        %1085 = vmatprep.subr.mxu0 0.0
        %1086 = vmatpush2.msra.mxu0 0.0
        %1087 = vmatprep.subr.mxu0 0.0
        %1088 = vmatpush2.msra.mxu0 0.0
        %1089 = vmatprep.subr.mxu0 0.0
        %1090 = vmatpush2.msra.mxu0 0.0
        %1091 = vmatprep.subr.mxu0 0.0
        %1092 = vmatpush2.msra.mxu0 0.0
        %1093 = vmatprep.subr.mxu0 0.0
        %1094 = vmatpush2.msra.mxu0 0.0
        %1095 = vmatprep.subr.mxu0 0.0
        %1096 = vmatpush2.msra.mxu0 0.0
        %1097 = vmatprep.subr.mxu0 0.0
        %1098 = vmatpush2.msra.mxu0 0.0
        %1099 = vmatprep.subr.mxu0 0.0
        %1100 = vmatpush2.msra.mxu0 0.0
        %1101 = vmatprep.subr.mxu0 0.0
        %1102 = vmatpush2.msra.mxu0 0.0
        %1103 = vmatprep.subr.mxu0 0.0
        %1104 = vmatpush2.msra.mxu0 0.0
        %1105 = vmatprep.subr.mxu0 0.0
        %1106 = vmatpush2.msra.mxu0 0.0
        %1107 = vmatprep.subr.mxu0 0.0
        %1108 = vmatpush2.msra.mxu0 0.0
        %1109 = vmatprep.subr.mxu0 0.0
        %1110 = vmatpush2.msra.mxu0 0.0
        %1111 = vmatprep.subr.mxu0 0.0
        %1112 = vmatpush2.msra.mxu0 0.0
        %1113 = vmatprep.mubr.f32.mxu0 0.0
        %1114 = vmatmul.mubr.f32.gmra.mxu0 %v1042
        %v1115 = vpop.f32.mrf.mxu0
        %v1116 = vadd.f32 0.0, %v1115
        %v1117 = vpop.f32.mrf.mxu0
        %v1118 = vadd.f32 0.0, %v1117
        %1119 = vdwg.mxu0
        %v1120 = vadd.f32 %v1031, %v1116
        %v1121 = vadd.f32 %v1032, %v1118
        %1122 = vrot.lane.b32.xlu0 %v430, 112
        %v1123 = vpop.permute.xlu0 %1122
        %1124 = vrot.lane.b32.xlu0 %v431, 112
        %v1125 = vpop.permute.xlu0 %1124
        %v1126 = vsel %vm947, %v1123, %v1125
        %v1128 = vsel %vm947, %v1125, 0.0
        %1129 = vrot.lane.b32.xlu0 %v432, 96
        %v1130 = vpop.permute.xlu0 %1129
        %v1131 = vsel %vm289, %v1130, 0
        %v1133 = vsel %vm293, %v1126, 0
        %v1136 = vsel %vm293, %v1128, 0
        %1138 = vmatprep.subr.mxu0 0.0
        %1139 = vmatpush1.msra.mxu0 0.0
        %1140 = vmatprep.subr.mxu0 0.0
        %1141 = vmatpush1.msra.mxu0 0.0
        %1142 = vmatprep.subr.mxu0 0.0
        %1143 = vmatpush1.msra.mxu0 0.0
        %1144 = vmatprep.subr.mxu0 0.0
        %1145 = vmatpush1.msra.mxu0 0.0
        %1146 = vmatprep.subr.mxu0 0.0
        %1147 = vmatpush1.msra.mxu0 0.0
        %1148 = vmatprep.subr.mxu0 0.0
        %1149 = vmatpush1.msra.mxu0 0.0
        %1150 = vmatprep.subr.mxu0 0.0
        %1151 = vmatpush1.msra.mxu0 0.0
        %1152 = vmatprep.subr.mxu0 0.0
        %1153 = vmatpush1.msra.mxu0 0.0
        %1154 = vmatprep.subr.mxu0 0.0
        %1155 = vmatpush1.msra.mxu0 0.0
        %1156 = vmatprep.subr.mxu0 0.0
        %1157 = vmatpush1.msra.mxu0 0.0
        %1158 = vmatprep.subr.mxu0 0.0
        %1159 = vmatpush1.msra.mxu0 0.0
        %1160 = vmatprep.subr.mxu0 0.0
        %1161 = vmatpush1.msra.mxu0 0.0
        %1162 = vmatprep.subr.mxu0 0.0
        %1163 = vmatpush1.msra.mxu0 0.0
        %1164 = vmatprep.subr.mxu0 0.0
        %1165 = vmatpush1.msra.mxu0 0.0
        %1166 = vmatprep.subr.mxu0 0.0
        %1167 = vmatpush1.msra.mxu0 0.0
        %1168 = vmatprep.subr.mxu0 %v1136
        %1169 = vmatpush1.msra.mxu0 %v1133
        %1170 = vmatprep.subr.mxu0 0.0
        %1171 = vmatpush2.msra.mxu0 0.0
        %1172 = vmatprep.subr.mxu0 0.0
        %1173 = vmatpush2.msra.mxu0 0.0
        %1174 = vmatprep.subr.mxu0 0.0
        %1175 = vmatpush2.msra.mxu0 0.0
        %1176 = vmatprep.subr.mxu0 0.0
        %1177 = vmatpush2.msra.mxu0 0.0
        %1178 = vmatprep.subr.mxu0 0.0
        %1179 = vmatpush2.msra.mxu0 0.0
        %1180 = vmatprep.subr.mxu0 0.0
        %1181 = vmatpush2.msra.mxu0 0.0
        %1182 = vmatprep.subr.mxu0 0.0
        %1183 = vmatpush2.msra.mxu0 0.0
        %1184 = vmatprep.subr.mxu0 0.0
        %1185 = vmatpush2.msra.mxu0 0.0
        %1186 = vmatprep.subr.mxu0 0.0
        %1187 = vmatpush2.msra.mxu0 0.0
        %1188 = vmatprep.subr.mxu0 0.0
        %1189 = vmatpush2.msra.mxu0 0.0
        %1190 = vmatprep.subr.mxu0 0.0
        %1191 = vmatpush2.msra.mxu0 0.0
        %1192 = vmatprep.subr.mxu0 0.0
        %1193 = vmatpush2.msra.mxu0 0.0
        %1194 = vmatprep.subr.mxu0 0.0
        %1195 = vmatpush2.msra.mxu0 0.0
        %1196 = vmatprep.subr.mxu0 0.0
        %1197 = vmatpush2.msra.mxu0 0.0
        %1198 = vmatprep.subr.mxu0 0.0
        %1199 = vmatpush2.msra.mxu0 0.0
        %1200 = vmatprep.subr.mxu0 0.0
        %1201 = vmatpush2.msra.mxu0 0.0
        %1202 = vmatprep.mubr.f32.mxu0 0.0
        %1203 = vmatmul.mubr.f32.gmra.mxu0 %v1131
        %v1204 = vpop.f32.mrf.mxu0
        %v1205 = vadd.f32 0.0, %v1204
        %v1206 = vpop.f32.mrf.mxu0
        %v1207 = vadd.f32 0.0, %v1206
        %1208 = vdwg.mxu0
        %v1209 = vadd.f32 %v1120, %v1205
        %v1210 = vadd.f32 %v1121, %v1207
        %1211 = vset.pattern.permute.xlu0 1
        %1212 = vperm.xlu0 %1211, %v278
        %v1213 = vpop.permute.xlu0 %1212
        %v1215 = vadd.f32 %v1209, %v1213
        %v1216 = vadd.f32 %v1210, %v1213
        %v1217 = vmax.f32 %v1215, 0.0
        %v1218 = vmax.f32 %v1216, 0.0
        %v1219 = vld [vmem:[%s3] sm:$0xff]
        %v1220 = vld [vmem:[%s3 + $0x8] sm:$0xff]
        %v1221 = vld [vmem:[%s4] sm:$0xff]
        %v1222 = vld [vmem:[%s4 + $0x8] sm:$0xff]
        %v1224 = vsel %vm289, %v1221, 0
        %v1227 = vsel %vm289, %v1222, 0
        %1229 = vmatprep.subr.mxu0 0.0
        %1230 = vmatpush1.msra.mxu0 0.0
        %1231 = vmatprep.subr.mxu0 0.0
        %1232 = vmatpush1.msra.mxu0 0.0
        %1233 = vmatprep.subr.mxu0 0.0
        %1234 = vmatpush1.msra.mxu0 0.0
        %1235 = vmatprep.subr.mxu0 0.0
        %1236 = vmatpush1.msra.mxu0 0.0
        %1237 = vmatprep.subr.mxu0 0.0
        %1238 = vmatpush1.msra.mxu0 0.0
        %1239 = vmatprep.subr.mxu0 0.0
        %1240 = vmatpush1.msra.mxu0 0.0
        %1241 = vmatprep.subr.mxu0 0.0
        %1242 = vmatpush1.msra.mxu0 0.0
        %1243 = vmatprep.subr.mxu0 0.0
        %1244 = vmatpush1.msra.mxu0 0.0
        %1245 = vmatprep.subr.mxu0 0.0
        %1246 = vmatpush1.msra.mxu0 0.0
        %1247 = vmatprep.subr.mxu0 0.0
        %1248 = vmatpush1.msra.mxu0 0.0
        %1249 = vmatprep.subr.mxu0 0.0
        %1250 = vmatpush1.msra.mxu0 0.0
        %1251 = vmatprep.subr.mxu0 0.0
        %1252 = vmatpush1.msra.mxu0 0.0
        %1253 = vmatprep.subr.mxu0 0.0
        %1254 = vmatpush1.msra.mxu0 0.0
        %1255 = vmatprep.subr.mxu0 0.0
        %1256 = vmatpush1.msra.mxu0 0.0
        %1257 = vmatprep.subr.mxu0 0.0
        %1258 = vmatpush1.msra.mxu0 0.0
        %1259 = vmatprep.subr.mxu0 %v296
        %1260 = vmatpush1.msra.mxu0 %v294
        %1261 = vmatprep.subr.mxu0 0.0
        %1262 = vmatpush2.msra.mxu0 0.0
        %1263 = vmatprep.subr.mxu0 0.0
        %1264 = vmatpush2.msra.mxu0 0.0
        %1265 = vmatprep.subr.mxu0 0.0
        %1266 = vmatpush2.msra.mxu0 0.0
        %1267 = vmatprep.subr.mxu0 0.0
        %1268 = vmatpush2.msra.mxu0 0.0
        %1269 = vmatprep.subr.mxu0 0.0
        %1270 = vmatpush2.msra.mxu0 0.0
        %1271 = vmatprep.subr.mxu0 0.0
        %1272 = vmatpush2.msra.mxu0 0.0
        %1273 = vmatprep.subr.mxu0 0.0
        %1274 = vmatpush2.msra.mxu0 0.0
        %1275 = vmatprep.subr.mxu0 0.0
        %1276 = vmatpush2.msra.mxu0 0.0
        %1277 = vmatprep.subr.mxu0 0.0
        %1278 = vmatpush2.msra.mxu0 0.0
        %1279 = vmatprep.subr.mxu0 0.0
        %1280 = vmatpush2.msra.mxu0 0.0
        %1281 = vmatprep.subr.mxu0 0.0
        %1282 = vmatpush2.msra.mxu0 0.0
        %1283 = vmatprep.subr.mxu0 0.0
        %1284 = vmatpush2.msra.mxu0 0.0
        %1285 = vmatprep.subr.mxu0 0.0
        %1286 = vmatpush2.msra.mxu0 0.0
        %1287 = vmatprep.subr.mxu0 0.0
        %1288 = vmatpush2.msra.mxu0 0.0
        %1289 = vmatprep.subr.mxu0 0.0
        %1290 = vmatpush2.msra.mxu0 0.0
        %1291 = vmatprep.subr.mxu0 0.0
        %1292 = vmatpush2.msra.mxu0 0.0
        %1293 = vmatprep.mubr.f32.mxu0 0.0
        %1294 = vmatmul.mubr.f32.gmra.mxu0 %v1224
        %v1295 = vpop.f32.mrf.mxu0
        %v1296 = vadd.f32 0.0, %v1295
        %v1297 = vpop.f32.mrf.mxu0
        %v1298 = vadd.f32 0.0, %v1297
        %1299 = vmatprep.mubr.f32.mxu0 0.0
        %1300 = vmatmul.mubr.f32.gmra.mxu0 %v1227
        %v1301 = vpop.f32.mrf.mxu0
        %v1302 = vadd.f32 0.0, %v1301
        %v1303 = vpop.f32.mrf.mxu0
        %v1304 = vadd.f32 0.0, %v1303
        %1305 = vdwg.mxu0
        %v1307 = vsel %vm289, %v1219, 0
        %v1310 = vsel %vm289, %v1220, 0
        %v1313 = vsel %vm293, %v1217, 0
        %v1316 = vsel %vm293, %v1218, 0
        %1318 = vmatprep.subr.mxu0 0.0
        %1319 = vmatpush1.msra.mxu0 0.0
        %1320 = vmatprep.subr.mxu0 0.0
        %1321 = vmatpush1.msra.mxu0 0.0
        %1322 = vmatprep.subr.mxu0 0.0
        %1323 = vmatpush1.msra.mxu0 0.0
        %1324 = vmatprep.subr.mxu0 0.0
        %1325 = vmatpush1.msra.mxu0 0.0
        %1326 = vmatprep.subr.mxu0 0.0
        %1327 = vmatpush1.msra.mxu0 0.0
        %1328 = vmatprep.subr.mxu0 0.0
        %1329 = vmatpush1.msra.mxu0 0.0
        %1330 = vmatprep.subr.mxu0 0.0
        %1331 = vmatpush1.msra.mxu0 0.0
        %1332 = vmatprep.subr.mxu0 0.0
        %1333 = vmatpush1.msra.mxu0 0.0
        %1334 = vmatprep.subr.mxu0 0.0
        %1335 = vmatpush1.msra.mxu0 0.0
        %1336 = vmatprep.subr.mxu0 0.0
        %1337 = vmatpush1.msra.mxu0 0.0
        %1338 = vmatprep.subr.mxu0 0.0
        %1339 = vmatpush1.msra.mxu0 0.0
        %1340 = vmatprep.subr.mxu0 0.0
        %1341 = vmatpush1.msra.mxu0 0.0
        %1342 = vmatprep.subr.mxu0 0.0
        %1343 = vmatpush1.msra.mxu0 0.0
        %1344 = vmatprep.subr.mxu0 0.0
        %1345 = vmatpush1.msra.mxu0 0.0
        %1346 = vmatprep.subr.mxu0 0.0
        %1347 = vmatpush1.msra.mxu0 0.0
        %1348 = vmatprep.subr.mxu0 %v1316
        %1349 = vmatpush1.msra.mxu0 %v1313
        %1350 = vmatprep.subr.mxu0 0.0
        %1351 = vmatpush2.msra.mxu0 0.0
        %1352 = vmatprep.subr.mxu0 0.0
        %1353 = vmatpush2.msra.mxu0 0.0
        %1354 = vmatprep.subr.mxu0 0.0
        %1355 = vmatpush2.msra.mxu0 0.0
        %1356 = vmatprep.subr.mxu0 0.0
        %1357 = vmatpush2.msra.mxu0 0.0
        %1358 = vmatprep.subr.mxu0 0.0
        %1359 = vmatpush2.msra.mxu0 0.0
        %1360 = vmatprep.subr.mxu0 0.0
        %1361 = vmatpush2.msra.mxu0 0.0
        %1362 = vmatprep.subr.mxu0 0.0
        %1363 = vmatpush2.msra.mxu0 0.0
        %1364 = vmatprep.subr.mxu0 0.0
        %1365 = vmatpush2.msra.mxu0 0.0
        %1366 = vmatprep.subr.mxu0 0.0
        %1367 = vmatpush2.msra.mxu0 0.0
        %1368 = vmatprep.subr.mxu0 0.0
        %1369 = vmatpush2.msra.mxu0 0.0
        %1370 = vmatprep.subr.mxu0 0.0
        %1371 = vmatpush2.msra.mxu0 0.0
        %1372 = vmatprep.subr.mxu0 0.0
        %1373 = vmatpush2.msra.mxu0 0.0
        %1374 = vmatprep.subr.mxu0 0.0
        %1375 = vmatpush2.msra.mxu0 0.0
        %1376 = vmatprep.subr.mxu0 0.0
        %1377 = vmatpush2.msra.mxu0 0.0
        %1378 = vmatprep.subr.mxu0 0.0
        %1379 = vmatpush2.msra.mxu0 0.0
        %1380 = vmatprep.subr.mxu0 0.0
        %1381 = vmatpush2.msra.mxu0 0.0
        %1382 = vmatprep.mubr.f32.mxu0 0.0
        %1383 = vmatmul.mubr.f32.gmra.mxu0 %v1307
        %v1384 = vpop.f32.mrf.mxu0
        %v1385 = vadd.f32 %v1296, %v1384
        %v1386 = vpop.f32.mrf.mxu0
        %v1387 = vadd.f32 %v1298, %v1386
        %1388 = vmatprep.mubr.f32.mxu0 0.0
        %1389 = vmatmul.mubr.f32.gmra.mxu0 %v1310
        %v1390 = vpop.f32.mrf.mxu0
        %v1391 = vadd.f32 %v1302, %v1390
        %v1392 = vpop.f32.mrf.mxu0
        %v1393 = vadd.f32 %v1304, %v1392
        %1394 = vdwg.mxu0
        %1395 = vset.pattern.permute.xlu0 2
        %1396 = vperm.xlu0 %1395, %v278
        %v1397 = vpop.permute.xlu0 %1396
        %1400 = vset.pattern.permute.xlu0 2
        %1401 = vperm.xlu0 %1400, %v279
        %v1402 = vpop.permute.xlu0 %1401
        %v1404 = vadd.f32 %v1385, %v1397
        %v1405 = vadd.f32 %v1387, %v1397
        %v1406 = vadd.f32 %v1391, %v1402
        %v1407 = vadd.f32 %v1393, %v1402
        %v1408 = vmax.f32 %v1404, 0.0
        %v1409 = vmax.f32 %v1405, 0.0
        %v1410 = vmax.f32 %v1406, 0.0
        %v1411 = vmax.f32 %v1407, 0.0
        %1412 = vst [vmem:[%s271] sm:$0xff] %v1408
        %1413 = vst [vmem:[%s271 + $0x8] sm:$0xff] %v1409
        %1414 = vst [vmem:[%s271 + $0x10] sm:$0xff] %v1410
        %1415 = vst [vmem:[%s271 + $0x18] sm:$0xff] %v1411
        %s1416 = sand.u32 %s181, 1
        %s1417 = scalar_lea.sflag [#allocation3], %s1416
        %s1418 = sand.u32 %s181, 1
        %s1419 = smul.addr %s1418, 32
        %s1420 = scalar_lea.vmem [#allocation2], %s1419
        // Predicated region
        $region49: #{tpu_custom_call.1} parent=47 // pred_check
          %p1421 = pneg %p191
        $region50: #{tpu_custom_call.1} parent=47 // pred_check_branch
          %1423 = sbr.rel (%p1421) target = $region52
        $region51: #{tpu_custom_call.1} parent=47 // pred_region
          %s1425 = ssub.s32 512, 512
          %1426 = vsyncadd %s1417, %s1425
          %s1427 = smul.addr %s21, 4
          %s1428 = smul.addr %s1427, 128
          %s1429 = scalar_lea.hbm %s7, %s1428
          %s1430 = sshll.u32 %s1420, 4
          %s1431 = int_to_ptr.vmem [resolvable:$true] %s1430
          %1436 = dma.vmem_to_hbm [thread:$0]  %s1431, 512, %s1429, %s1417, 256, 256, 16
        $region52: #{tpu_custom_call.1} parent=47 // pred_fallthru
          _
      $region48: #{tpu_custom_call.1} parent=5 // pred_fallthru
        _
      %p1437 = scmp.le.s32.totalorder 2, %s16
      // Predicated region
      $region53: #{tpu_custom_call.1} parent=5 // pred_check
        %p1438 = pneg %p1437
      $region54: #{tpu_custom_call.1} parent=5 // pred_check_branch
        %1440 = sbr.rel (%p1438) target = $region56
      $region55: #{tpu_custom_call.1} parent=5 // pred_region
        %s1441 = ssub.s32 %s16, 2
        // Predicated region
        $region57: #{tpu_custom_call.1} parent=55 // pred_check
          %p1442 = pneg %p197
        $region58: #{tpu_custom_call.1} parent=55 // pred_check_branch
          %1444 = sbr.rel (%p1442) target = $region60
        $region59: #{tpu_custom_call.1} parent=55 // pred_region
          %s1445 = sand.u32 %s182, 1
          %s1446 = scalar_lea.sflag [#allocation3], %s1445
          %s1447 = sand.u32 %s182, 1
          %s1448 = smul.addr %s1447, 32
          %s1449 = scalar_lea.vmem [#allocation2], %s1448
          %1450 = dma.done %s1446, 512
        $region60: #{tpu_custom_call.1} parent=55 // pred_fallthru
          _
      $region56: #{tpu_custom_call.1} parent=5 // pred_fallthru
        _
    $region6: #{tpu_custom_call.1} parent=1 // loop_footer
      %s20 = sadd.s32 1, %s16
    $region7: #{tpu_custom_call.1} parent=1 // loop_footer_branch
      %15 = sbr.rel target = $region3
    $region8: #{tpu_custom_call.1} parent=1 // loop_exit
      _
    %1451 = vsyncpa [#allocation3], 1
    %s1452 = scalar_lea.sflag [#allocation3], 1
    %1453 = vsyncpa %s1452, 1

</llo_original>
